<compile_context>
chip_gen: v7x
topology: tpu7x:2x2x1
jax: 0.10.0
libtpu: 0.0.40
codegen_flags: <defaults>
</compile_context>

<pallas_src>
import jax
import jax.numpy as jnp
from jax.experimental import pallas as pl
from jax.experimental.pallas import tpu as pltpu


def vae_forward_kernel(x_ref, we1_ref, be1_ref, we2_ref, be2_ref, eps_ref,
                       wd1_ref, bd1_ref, wd2_ref, bd2_ref,
                       recon_ref, enc_ref):
    latent_dim = eps_ref.shape[1]

    # ---- encoder: Linear -> ReLU -> Linear (bf16 operands, f32 accumulate) ----
    x = x_ref[...]
    h = jnp.dot(x.astype(jnp.bfloat16), we1_ref[...],
                preferred_element_type=jnp.float32) + be1_ref[...]
    h = jnp.maximum(h, 0.0)                                           # ReLU (f32)
    enc = jnp.dot(h.astype(jnp.bfloat16), we2_ref[...],
                  preferred_element_type=jnp.float32) + be2_ref[...]
    enc_ref[...] = enc          # lane-dense (TILE_B, 2*latent); split in wrapper

    # ---- reparameterize: z = mean + eps * exp(0.5 * log_var)  (all f32) ----
    mean = enc[:, :latent_dim]
    log_var = enc[:, latent_dim:2 * latent_dim]
    z = mean + eps_ref[...] * jnp.exp(0.5 * log_var)

    # ---- decoder: Linear -> ReLU -> Linear -> Sigmoid ----
    h2 = jnp.dot(z.astype(jnp.bfloat16), wd1_ref[...],
                 preferred_element_type=jnp.float32) + bd1_ref[...]
    h2 = jnp.maximum(h2, 0.0)                                         # ReLU (f32)
    logits = jnp.dot(h2.astype(jnp.bfloat16), wd2_ref[...],
                     preferred_element_type=jnp.float32) + bd2_ref[...]
    # sigmoid(x) = 1 / (1 + exp(-x)); approx reciprocal -> EUP slot.
    recon_ref[...] = pl.reciprocal(1.0 + jnp.exp(-logits), approx=True)


def _round_up(n, m):
    return ((n + m - 1) // m) * m


def molecule_vae_forward(x, eps, params, *, tile_b=128):
    """Fused VAE forward. x: [B, input_dim] f32, eps: [B, latent_dim] f32.

    Returns (recon, mean, log_var), matching the PyTorch module's forward().
    """
    we1, be1, we2, be2, wd1, bd1, wd2, bd2 = params
    B, input_dim = x.shape
    latent_dim = eps.shape[1]

    # Pre-cast weights to bf16 once (matmul operands); biases stay f32.
    we1, we2, wd1, wd2 = (w.astype(jnp.bfloat16) for w in (we1, we2, wd1, wd2))

    # Batch tiling: clamp tile to the (8-aligned) batch and pad B to a multiple.
    tile_b = max(8, min(tile_b, _round_up(B, 8)))
    b_pad = _round_up(B, tile_b)
    if b_pad != B:
        x = jnp.pad(x, ((0, b_pad - B), (0, 0)))
        eps = jnp.pad(eps, ((0, b_pad - B), (0, 0)))
    grid = (b_pad // tile_b,)

    def batch_spec(feat):
        return pl.BlockSpec((tile_b, feat), lambda i: (i, 0))

    def const_spec(arr):
        # Full-array block, constant index -> fetched once, VMEM-resident.
        return pl.BlockSpec(arr.shape, lambda i: (0, 0))

    recon, enc = pl.pallas_call(
        vae_forward_kernel,
        out_shape=(
            jax.ShapeDtypeStruct((b_pad, input_dim), jnp.float32),
            jax.ShapeDtypeStruct((b_pad, 2 * latent_dim), jnp.float32),
        ),
        grid=grid,
        in_specs=[
            batch_spec(input_dim),                       # x
            const_spec(we1), const_spec(be1),            # encoder layer 1
            const_spec(we2), const_spec(be2),            # encoder layer 2
            batch_spec(latent_dim),                      # eps
            const_spec(wd1), const_spec(bd1),            # decoder layer 1
            const_spec(wd2), const_spec(bd2),            # decoder layer 2
        ],
        out_specs=(batch_spec(input_dim), batch_spec(2 * latent_dim)),
        compiler_params=pltpu.CompilerParams(
            dimension_semantics=("parallel",),           # dual-TC sharding on v7x
            vmem_limit_bytes=64 * 1024 * 1024,
        ),
    )(x, we1, be1, we2, be2, eps, wd1, bd1, wd2, bd2)

    recon = recon[:B]
    enc = enc[:B]
    return recon, enc[:, :latent_dim], enc[:, latent_dim:]


def init_params(key, input_dim, hidden_dim, latent_dim):
    """Deterministic synthetic parameters. Weights stored as (in, out), f32."""
    ks = jax.random.split(key, 8)
    scale = 0.05
    we1 = scale * jax.random.normal(ks[0], (input_dim, hidden_dim), jnp.float32)
    be1 = scale * jax.random.normal(ks[1], (1, hidden_dim), jnp.float32)
    we2 = scale * jax.random.normal(ks[2], (hidden_dim, 2 * latent_dim), jnp.float32)
    be2 = scale * jax.random.normal(ks[3], (1, 2 * latent_dim), jnp.float32)
    wd1 = scale * jax.random.normal(ks[4], (latent_dim, hidden_dim), jnp.float32)
    bd1 = scale * jax.random.normal(ks[5], (1, hidden_dim), jnp.float32)
    wd2 = scale * jax.random.normal(ks[6], (hidden_dim, input_dim), jnp.float32)
    bd2 = scale * jax.random.normal(ks[7], (1, input_dim), jnp.float32)
    return (we1, be1, we2, be2, wd1, bd1, wd2, bd2)


def reference_forward(x, eps, params):
    """Pure-JAX f32 reference mirroring the PyTorch module semantics."""
    we1, be1, we2, be2, wd1, bd1, wd2, bd2 = params
    h = jnp.maximum(x @ we1 + be1, 0.0)
    enc = h @ we2 + be2
    latent_dim = eps.shape[1]
    mean, log_var = enc[:, :latent_dim], enc[:, latent_dim:]
    z = mean + eps * jnp.exp(0.5 * log_var)
    h2 = jnp.maximum(z @ wd1 + bd1, 0.0)
    recon = jax.nn.sigmoid(h2 @ wd2 + bd2)
    return recon, mean, log_var


if __name__ == "__main__":
    # Small but grid-exercising shapes: B=256 with TILE_B=128 -> 2 grid steps;
    # feature dims are multiples of 128 for clean lane tiling.
    B, INPUT_DIM, HIDDEN_DIM, LATENT_DIM = 256, 256, 128, 128
    TILE_B = 128   # use 256+ for production batches on v6e/v7x

    key = jax.random.PRNGKey(0)
    k_x, k_eps, k_p = jax.random.split(key, 3)

    x = jax.random.uniform(k_x, (B, INPUT_DIM), jnp.float32)
    eps = jax.random.normal(k_eps, (B, LATENT_DIM), jnp.float32)  # randn_like noise
    params = init_params(k_p, INPUT_DIM, HIDDEN_DIM, LATENT_DIM)

    recon, mean, log_var = molecule_vae_forward(x, eps, params, tile_b=TILE_B)
    jax.block_until_ready((recon, mean, log_var))

    # Correctness vs. pure-f32 reference; bf16 matmul operands (and the approx
    # reciprocal in the sigmoid) warrant a loosened tolerance.
    r_recon, r_mean, r_logvar = reference_forward(x, eps, params)
    assert jnp.allclose(recon, r_recon, atol=3e-2, rtol=3e-2)
    assert jnp.allclose(mean, r_mean, atol=3e-2, rtol=3e-2)
    assert jnp.allclose(log_var, r_logvar, atol=3e-2, rtol=3e-2)

    print("KERNEL_OK")
</pallas_src>

<mosaic_0001>
module attributes {stable_mosaic.version = 11 : i64} {
  func.func @vae_forward_kernel(%arg0: i32, %arg1: memref<128x256xf32, #tpu.memory_space<vmem>>, %arg2: memref<256x128xbf16, #tpu.memory_space<vmem>>, %arg3: memref<1x128xf32, #tpu.memory_space<vmem>>, %arg4: memref<128x256xbf16, #tpu.memory_space<vmem>>, %arg5: memref<1x256xf32, #tpu.memory_space<vmem>>, %arg6: memref<128x128xf32, #tpu.memory_space<vmem>>, %arg7: memref<128x128xbf16, #tpu.memory_space<vmem>>, %arg8: memref<1x128xf32, #tpu.memory_space<vmem>>, %arg9: memref<128x256xbf16, #tpu.memory_space<vmem>>, %arg10: memref<1x256xf32, #tpu.memory_space<vmem>>, %arg11: memref<128x256xf32, #tpu.memory_space<vmem>>, %arg12: memref<128x256xf32, #tpu.memory_space<vmem>>) attributes {dimension_semantics = [#tpu.dimension_semantics<parallel>], iteration_bounds = array<i64: 2>, scalar_prefetch = 0 : i64, scratch_operands = 0 : i64, tpu.core_type = #tpu.core_type<tc>, window_params = [{transform_indices = @transform_0, window_bounds = array<i64: 128, 256>}, {pipeline_mode = #tpu.pipeline_mode<synchronous>, transform_indices = @transform_1, window_bounds = array<i64: 256, 128>}, {pipeline_mode = #tpu.pipeline_mode<synchronous>, transform_indices = @transform_2, window_bounds = array<i64: 1, 128>}, {pipeline_mode = #tpu.pipeline_mode<synchronous>, transform_indices = @transform_3, window_bounds = array<i64: 128, 256>}, {pipeline_mode = #tpu.pipeline_mode<synchronous>, transform_indices = @transform_4, window_bounds = array<i64: 1, 256>}, {transform_indices = @transform_5, window_bounds = array<i64: 128, 128>}, {pipeline_mode = #tpu.pipeline_mode<synchronous>, transform_indices = @transform_6, window_bounds = array<i64: 128, 128>}, {pipeline_mode = #tpu.pipeline_mode<synchronous>, transform_indices = @transform_7, window_bounds = array<i64: 1, 128>}, {pipeline_mode = #tpu.pipeline_mode<synchronous>, transform_indices = @transform_8, window_bounds = array<i64: 128, 256>}, {pipeline_mode = #tpu.pipeline_mode<synchronous>, transform_indices = @transform_9, window_bounds = array<i64: 1, 256>}, {transform_indices = @transform_10, window_bounds = array<i64: 128, 256>}, {transform_indices = @transform_11, window_bounds = array<i64: 128, 256>}]} {
    %c0 = arith.constant 0 : index
    %c0_0 = arith.constant 0 : index
    %0 = vector.load %arg1[%c0, %c0_0] : memref<128x256xf32, #tpu.memory_space<vmem>>, vector<128x256xf32>
    %1 = arith.truncf %0 : vector<128x256xf32> to vector<128x256xbf16>
    %c0_1 = arith.constant 0 : index
    %c0_2 = arith.constant 0 : index
    %2 = vector.load %arg2[%c0_1, %c0_2] : memref<256x128xbf16, #tpu.memory_space<vmem>>, vector<256x128xbf16>
    %cst = arith.constant dense<0.000000e+00> : vector<128x128xf32>
    %3 = tpu.matmul %1, %2, %cst {dimension_numbers = #tpu.dot_dimension_numbers<[1], [0], [0], [1], [0, 0, 1, 1], [], []>} : vector<128x256xbf16>, vector<256x128xbf16>, vector<128x128xf32> -> vector<128x128xf32>
    %c0_3 = arith.constant 0 : index
    %c0_4 = arith.constant 0 : index
    %4 = vector.load %arg3[%c0_3, %c0_4] : memref<1x128xf32, #tpu.memory_space<vmem>>, vector<1x128xf32>
    %5 = vector.broadcast %4 : vector<1x128xf32> to vector<128x128xf32>
    %6 = arith.addf %3, %5 : vector<128x128xf32>
    %cst_5 = arith.constant 0.000000e+00 : f32
    %7 = vector.broadcast %cst_5 : f32 to vector<128x128xf32>
    %8 = arith.maximumf %6, %7 : vector<128x128xf32>
    %9 = arith.truncf %8 : vector<128x128xf32> to vector<128x128xbf16>
    %c0_6 = arith.constant 0 : index
    %c0_7 = arith.constant 0 : index
    %10 = vector.load %arg4[%c0_6, %c0_7] : memref<128x256xbf16, #tpu.memory_space<vmem>>, vector<128x256xbf16>
    %cst_8 = arith.constant dense<0.000000e+00> : vector<128x256xf32>
    %11 = tpu.matmul %9, %10, %cst_8 {dimension_numbers = #tpu.dot_dimension_numbers<[1], [0], [0], [1], [0, 0, 1, 1], [], []>} : vector<128x128xbf16>, vector<128x256xbf16>, vector<128x256xf32> -> vector<128x256xf32>
    %c0_9 = arith.constant 0 : index
    %c0_10 = arith.constant 0 : index
    %12 = vector.load %arg5[%c0_9, %c0_10] : memref<1x256xf32, #tpu.memory_space<vmem>>, vector<1x256xf32>
    %13 = vector.broadcast %12 : vector<1x256xf32> to vector<128x256xf32>
    %14 = arith.addf %11, %13 : vector<128x256xf32>
    %c0_11 = arith.constant 0 : index
    %c0_12 = arith.constant 0 : index
    %15 = vector.load %arg12[%c0_11, %c0_12] : memref<128x256xf32, #tpu.memory_space<vmem>>, vector<128x256xf32>
    tpu.vector_store %arg12[%c0_11, %c0_12], %14 {strides = array<i32>} : memref<128x256xf32, #tpu.memory_space<vmem>>, vector<128x256xf32>,
    %16 = vector.extract_strided_slice %14 {offsets = [0, 0], sizes = [128, 128], strides = [1, 1]} : vector<128x256xf32> to vector<128x128xf32>
    %17 = vector.extract_strided_slice %14 {offsets = [0, 128], sizes = [128, 128], strides = [1, 1]} : vector<128x256xf32> to vector<128x128xf32>
    %c0_13 = arith.constant 0 : index
    %c0_14 = arith.constant 0 : index
    %18 = vector.load %arg6[%c0_13, %c0_14] : memref<128x128xf32, #tpu.memory_space<vmem>>, vector<128x128xf32>
    %cst_15 = arith.constant 5.000000e-01 : f32
    %19 = vector.broadcast %cst_15 : f32 to vector<128x128xf32>
    %20 = arith.mulf %19, %17 : vector<128x128xf32>
    %21 = math.exp %20 : vector<128x128xf32>
    %22 = arith.mulf %18, %21 : vector<128x128xf32>
    %23 = arith.addf %16, %22 : vector<128x128xf32>
    %24 = arith.truncf %23 : vector<128x128xf32> to vector<128x128xbf16>
    %c0_16 = arith.constant 0 : index
    %c0_17 = arith.constant 0 : index
    %25 = vector.load %arg7[%c0_16, %c0_17] : memref<128x128xbf16, #tpu.memory_space<vmem>>, vector<128x128xbf16>
    %cst_18 = arith.constant dense<0.000000e+00> : vector<128x128xf32>
    %26 = tpu.matmul %24, %25, %cst_18 {dimension_numbers = #tpu.dot_dimension_numbers<[1], [0], [0], [1], [0, 0, 1, 1], [], []>} : vector<128x128xbf16>, vector<128x128xbf16>, vector<128x128xf32> -> vector<128x128xf32>
    %c0_19 = arith.constant 0 : index
    %c0_20 = arith.constant 0 : index
    %27 = vector.load %arg8[%c0_19, %c0_20] : memref<1x128xf32, #tpu.memory_space<vmem>>, vector<1x128xf32>
    %28 = vector.broadcast %27 : vector<1x128xf32> to vector<128x128xf32>
    %29 = arith.addf %26, %28 : vector<128x128xf32>
    %cst_21 = arith.constant 0.000000e+00 : f32
    %30 = vector.broadcast %cst_21 : f32 to vector<128x128xf32>
    %31 = arith.maximumf %29, %30 : vector<128x128xf32>
    %32 = arith.truncf %31 : vector<128x128xf32> to vector<128x128xbf16>
    %c0_22 = arith.constant 0 : index
    %c0_23 = arith.constant 0 : index
    %33 = vector.load %arg9[%c0_22, %c0_23] : memref<128x256xbf16, #tpu.memory_space<vmem>>, vector<128x256xbf16>
    %cst_24 = arith.constant dense<0.000000e+00> : vector<128x256xf32>
    %34 = tpu.matmul %32, %33, %cst_24 {dimension_numbers = #tpu.dot_dimension_numbers<[1], [0], [0], [1], [0, 0, 1, 1], [], []>} : vector<128x128xbf16>, vector<128x256xbf16>, vector<128x256xf32> -> vector<128x256xf32>
    %c0_25 = arith.constant 0 : index
    %c0_26 = arith.constant 0 : index
    %35 = vector.load %arg10[%c0_25, %c0_26] : memref<1x256xf32, #tpu.memory_space<vmem>>, vector<1x256xf32>
    %36 = vector.broadcast %35 : vector<1x256xf32> to vector<128x256xf32>
    %37 = arith.addf %34, %36 : vector<128x256xf32>
    %cst_27 = arith.constant 0.000000e+00 : f32
    %38 = vector.broadcast %cst_27 : f32 to vector<128x256xf32>
    %39 = arith.subf %38, %37 : vector<128x256xf32>
    %40 = math.exp %39 : vector<128x256xf32>
    %cst_28 = arith.constant 1.000000e+00 : f32
    %41 = vector.broadcast %cst_28 : f32 to vector<128x256xf32>
    %42 = arith.addf %41, %40 : vector<128x256xf32>
    %43 = tpu.reciprocal %42 {approx = true} : vector<128x256xf32> -> vector<128x256xf32>
    %c0_29 = arith.constant 0 : index
    %c0_30 = arith.constant 0 : index
    %44 = vector.load %arg11[%c0_29, %c0_30] : memref<128x256xf32, #tpu.memory_space<vmem>>, vector<128x256xf32>
    tpu.vector_store %arg11[%c0_29, %c0_30], %43 {strides = array<i32>} : memref<128x256xf32, #tpu.memory_space<vmem>>, vector<128x256xf32>,
    return
  }
  func.func @transform_0(%arg0: i32) -> (i32, i32) {
    %c0_i32 = arith.constant 0 : i32
    %c0_i32_0 = arith.constant 0 : i32
    return %arg0, %c0_i32 : i32, i32
  }
  func.func @transform_1(%arg0: i32) -> (i32, i32) {
    %c0_i32 = arith.constant 0 : i32
    %c0_i32_0 = arith.constant 0 : i32
    %c0_i32_1 = arith.constant 0 : i32
    return %c0_i32, %c0_i32_0 : i32, i32
  }
  func.func @transform_2(%arg0: i32) -> (i32, i32) {
    %c0_i32 = arith.constant 0 : i32
    %c0_i32_0 = arith.constant 0 : i32
    %c0_i32_1 = arith.constant 0 : i32
    return %c0_i32, %c0_i32_0 : i32, i32
  }
  func.func @transform_3(%arg0: i32) -> (i32, i32) {
    %c0_i32 = arith.constant 0 : i32
    %c0_i32_0 = arith.constant 0 : i32
    %c0_i32_1 = arith.constant 0 : i32
    return %c0_i32, %c0_i32_0 : i32, i32
  }
  func.func @transform_4(%arg0: i32) -> (i32, i32) {
    %c0_i32 = arith.constant 0 : i32
    %c0_i32_0 = arith.constant 0 : i32
    %c0_i32_1 = arith.constant 0 : i32
    return %c0_i32, %c0_i32_0 : i32, i32
  }
  func.func @transform_5(%arg0: i32) -> (i32, i32) {
    %c0_i32 = arith.constant 0 : i32
    %c0_i32_0 = arith.constant 0 : i32
    return %arg0, %c0_i32 : i32, i32
  }
  func.func @transform_6(%arg0: i32) -> (i32, i32) {
    %c0_i32 = arith.constant 0 : i32
    %c0_i32_0 = arith.constant 0 : i32
    %c0_i32_1 = arith.constant 0 : i32
    return %c0_i32, %c0_i32_0 : i32, i32
  }
  func.func @transform_7(%arg0: i32) -> (i32, i32) {
    %c0_i32 = arith.constant 0 : i32
    %c0_i32_0 = arith.constant 0 : i32
    %c0_i32_1 = arith.constant 0 : i32
    return %c0_i32, %c0_i32_0 : i32, i32
  }
  func.func @transform_8(%arg0: i32) -> (i32, i32) {
    %c0_i32 = arith.constant 0 : i32
    %c0_i32_0 = arith.constant 0 : i32
    %c0_i32_1 = arith.constant 0 : i32
    return %c0_i32, %c0_i32_0 : i32, i32
  }
  func.func @transform_9(%arg0: i32) -> (i32, i32) {
    %c0_i32 = arith.constant 0 : i32
    %c0_i32_0 = arith.constant 0 : i32
    %c0_i32_1 = arith.constant 0 : i32
    return %c0_i32, %c0_i32_0 : i32, i32
  }
  func.func @transform_10(%arg0: i32) -> (i32, i32) {
    %c0_i32 = arith.constant 0 : i32
    %c0_i32_0 = arith.constant 0 : i32
    return %arg0, %c0_i32 : i32, i32
  }
  func.func @transform_11(%arg0: i32) -> (i32, i32) {
    %c0_i32 = arith.constant 0 : i32
    %c0_i32_0 = arith.constant 0 : i32
    return %arg0, %c0_i32 : i32, i32
  }
}

</mosaic_0001>

<llo_original>
// kernel: tpu_custom_call.1
$region0: #{tpu_custom_call.1}
  #allocation0 [shape = 'u32[]', space=smem, size = 0x4, offset = 0x4, fixed_abs, tag = 'smem constant byte address 0x4 - core index']
  #allocation1 [shape = 'u32[144,128]{1,0:T(1,128)}', space=vmem, size = 0x12000, scoped, tag = 'internal scratch']
  %s0 = inlined_call_operand.hbm [shape: f32[256,256], index: 0, kind: input, shape index: {}]
  %s1 = inlined_call_operand.hbm [shape: bf16[256,128], index: 1, kind: input, shape index: {}]
  %s2 = inlined_call_operand.hbm [shape: f32[1,128], index: 2, kind: input, shape index: {}]
  %s3 = inlined_call_operand.hbm [shape: bf16[128,256], index: 3, kind: input, shape index: {}]
  %s4 = inlined_call_operand.hbm [shape: f32[1,256], index: 4, kind: input, shape index: {}]
  %s5 = inlined_call_operand.hbm [shape: f32[256,128], index: 5, kind: input, shape index: {}]
  %s6 = inlined_call_operand.hbm [shape: bf16[128,128], index: 6, kind: input, shape index: {}]
  %s7 = inlined_call_operand.hbm [shape: f32[1,128], index: 7, kind: input, shape index: {}]
  %s8 = inlined_call_operand.hbm [shape: bf16[128,256], index: 8, kind: input, shape index: {}]
  %s9 = inlined_call_operand.hbm [shape: f32[1,256], index: 9, kind: input, shape index: {}]
  %s10 = inlined_call_operand.hbm [shape: f32[256,256], index: 10, kind: output, shape index: {0}]
  %s11 = inlined_call_operand.hbm [shape: f32[256,256], index: 11, kind: output, shape index: {1}]
  %12 = xla_tuple %s10, %s11
  %s13 = sld [smem:[#allocation0]]
  $region121: #{tpu_custom_call.1} parent=0
    _
  %s15 = ssub.s32 1, %s13
  %s16 = scalar_select 0, %s15, %s13
  $region1: #{tpu_custom_call.1} parent=0
    #allocation2 [shape = 'u8[262144]{0}', space=vmem, size = 0x40000, scoped, tag = 'input window, operand 0']
    #allocation3 [shape = 's32[2]{0}', space=sflag, size = 0x8, scoped, tag = 'scoped memory for tpu_custom_call.1']
    #allocation4 [shape = 's32[2]{0}', space=sflag, size = 0x8, scoped, tag = 'scoped memory for tpu_custom_call.1']
    #allocation5 [shape = 'u8[65536]{0}', space=vmem, size = 0x10000, scoped, tag = 'input window, operand 1, single buffered']
    #allocation6 [shape = 's32[1]{0}', space=sflag, size = 0x4, scoped, tag = 'scoped memory for tpu_custom_call.1']
    #allocation7 [shape = 'u8[512]{0}', space=vmem, size = 0x400, scoped, tag = 'input window, operand 2, single buffered']
    #allocation8 [shape = 'u8[65536]{0}', space=vmem, size = 0x10000, scoped, tag = 'input window, operand 3, single buffered']
    #allocation9 [shape = 's32[1]{0}', space=sflag, size = 0x4, scoped, tag = 'scoped memory for tpu_custom_call.1']
    #allocation10 [shape = 'u8[1024]{0}', space=vmem, size = 0x400, scoped, tag = 'input window, operand 4, single buffered']
    #allocation11 [shape = 'u8[131072]{0}', space=vmem, size = 0x20000, scoped, tag = 'input window, operand 5']
    #allocation12 [shape = 's32[2]{0}', space=sflag, size = 0x8, scoped, tag = 'scoped memory for tpu_custom_call.1']
    #allocation13 [shape = 'u8[32768]{0}', space=vmem, size = 0x8000, scoped, tag = 'input window, operand 6, single buffered']
    #allocation14 [shape = 'u8[512]{0}', space=vmem, size = 0x400, scoped, tag = 'input window, operand 7, single buffered']
    #allocation15 [shape = 's32[1]{0}', space=sflag, size = 0x4, scoped, tag = 'scoped memory for tpu_custom_call.1']
    #allocation16 [shape = 'u8[65536]{0}', space=vmem, size = 0x10000, scoped, tag = 'input window, operand 8, single buffered']
    #allocation17 [shape = 'u8[1024]{0}', space=vmem, size = 0x400, scoped, tag = 'input window, operand 9, single buffered']
    #allocation18 [shape = 's32[1]{0}', space=sflag, size = 0x4, scoped, tag = 'scoped memory for tpu_custom_call.1']
    #allocation19 [shape = 'u8[262144]{0}', space=vmem, size = 0x40000, scoped, tag = 'output window, operand 0']
    #allocation20 [shape = 'u8[262144]{0}', space=vmem, size = 0x40000, scoped, tag = 'output window, operand 1']
    #allocation21 [shape = 's32[2]{0}', space=sflag, size = 0x8, scoped, tag = 'scoped memory for tpu_custom_call.1']
    %17 = vsyncpa [#allocation3], 0
    %s18 = scalar_lea.sflag [#allocation3], 1
    %19 = vsyncpa %s18, 0
    %20 = vsyncpa [#allocation6], 0
    %21 = vsyncpa [#allocation9], 0
    %22 = vsyncpa [#allocation12], 0
    %s23 = scalar_lea.sflag [#allocation12], 1
    %24 = vsyncpa %s23, 0
    %25 = vsyncpa [#allocation15], 0
    %26 = vsyncpa [#allocation18], 0
    %27 = vsyncpa [#allocation4], 0
    %s28 = scalar_lea.sflag [#allocation4], 1
    %29 = vsyncpa %s28, 0
    %30 = vsyncpa [#allocation21], 0
    %s31 = scalar_lea.sflag [#allocation21], 1
    %32 = vsyncpa %s31, 0
    loop: start=0, step=1, limit=4
    $region2: #{tpu_custom_call.1} parent=1 // loop_pre_header
      _
    $region3: #{tpu_custom_call.1} parent=1 // loop_header
      %s34 = sphi 0, %s38
      %p35 = scmp.ge.s32.totalorder %s34, 4
      %s44 = sphi 0, %s46
      %s47 = sphi 0, %s44
      %s48 = sphi 0, %s47
      %s64 = sphi 0, %s48
      %s68 = sphi 0, %s68
      %s70 = sphi 0, %s68
      %s71 = sphi 0, %s70
      %s85 = sphi 0, %s71
      %s89 = sphi 0, %s89
      %s91 = sphi 0, %s89
      %s92 = sphi 0, %s91
      %s106 = sphi 0, %s92
      %s110 = sphi 0, %s110
      %s112 = sphi 0, %s110
      %s113 = sphi 0, %s112
      %s127 = sphi 0, %s113
      %s131 = sphi 0, %s131
      %s133 = sphi 0, %s131
      %s134 = sphi 0, %s133
      %s148 = sphi 0, %s134
      %s154 = sphi 0, %s156
      %s157 = sphi 0, %s154
      %s158 = sphi 0, %s157
      %s174 = sphi 0, %s158
      %s178 = sphi 0, %s178
      %s180 = sphi 0, %s178
      %s181 = sphi 0, %s180
      %s195 = sphi 0, %s181
      %s199 = sphi 0, %s199
      %s201 = sphi 0, %s199
      %s202 = sphi 0, %s201
      %s216 = sphi 0, %s202
      %s220 = sphi 0, %s220
      %s222 = sphi 0, %s220
      %s223 = sphi 0, %s222
      %s237 = sphi 0, %s223
      %s241 = sphi 0, %s241
      %s243 = sphi 0, %s241
      %s244 = sphi 0, %s243
      %s258 = sphi 0, %s244
      %s264 = sphi 0, %s266
      %s267 = sphi 0, %s264
      %s268 = sphi 0, %s267
      %s284 = sphi 0, %s268
      %s290 = sphi 0, %s292
      %s293 = sphi 0, %s290
      %s294 = sphi 0, %s293
      %s310 = sphi 0, %s294
    $region4: #{tpu_custom_call.1} parent=1 // loop_header_branch
      %37 = sbr.rel (%p35) target = $region8
    $region5: #{tpu_custom_call.1} parent=1 // loop_body
      %s39 = ssub.s32 %s34, 1
      %s40 = ssub.s32 %s34, 2
      %s41 = sadd.s32 %s34, 1
      %s42 = ssub.s32 %s34, %s41
      %p43 = scmp.eq.s32.totalorder %s42, 0
      %s45 = sadd.s32 %s44, 1
      %s46 = scalar_select %p43, %s44, %s45
      %p49 = pneg %p43
      %p50 = scmp.eq.s32.totalorder %s34, 1
      %p51 = por %p49, %p50
      %p52 = scmp.ne.s32.totalorder %s44, %s47
      %p53 = scmp.eq.s32.totalorder %s34, 0
      %p54 = por %p52, %p53
      %p55 = scmp.ne.s32.totalorder %s44, %s47
      %p56 = scmp.eq.s32.totalorder %s39, 1
      %p57 = por %p55, %p56
      %p58 = scmp.ne.s32.totalorder %s47, %s48
      %p59 = scmp.eq.s32.totalorder %s39, 0
      %p60 = por %p58, %p59
      %p61 = scmp.ne.s32.totalorder %s47, %s48
      %p62 = scmp.eq.s32.totalorder %s40, 1
      %p63 = por %p61, %p62
      %p65 = scmp.ne.s32.totalorder %s48, %s64
      %p66 = scmp.eq.s32.totalorder %s40, 0
      %p67 = por %p65, %p66
      %s69 = sadd.s32 %s68, 1
      %p72 = scmp.eq.s32.totalorder %s34, 1
      %p73 = scmp.ne.s32.totalorder %s68, %s70
      %p74 = scmp.eq.s32.totalorder %s34, 0
      %p75 = por %p73, %p74
      %p76 = scmp.ne.s32.totalorder %s68, %s70
      %p77 = scmp.eq.s32.totalorder %s39, 1
      %p78 = por %p76, %p77
      %p79 = scmp.ne.s32.totalorder %s70, %s71
      %p80 = scmp.eq.s32.totalorder %s39, 0
      %p81 = por %p79, %p80
      %p82 = scmp.ne.s32.totalorder %s70, %s71
      %p83 = scmp.eq.s32.totalorder %s40, 1
      %p84 = por %p82, %p83
      %p86 = scmp.ne.s32.totalorder %s71, %s85
      %p87 = scmp.eq.s32.totalorder %s40, 0
      %p88 = por %p86, %p87
      %s90 = sadd.s32 %s89, 1
      %p93 = scmp.eq.s32.totalorder %s34, 1
      %p94 = scmp.ne.s32.totalorder %s89, %s91
      %p95 = scmp.eq.s32.totalorder %s34, 0
      %p96 = por %p94, %p95
      %p97 = scmp.ne.s32.totalorder %s89, %s91
      %p98 = scmp.eq.s32.totalorder %s39, 1
      %p99 = por %p97, %p98
      %p100 = scmp.ne.s32.totalorder %s91, %s92
      %p101 = scmp.eq.s32.totalorder %s39, 0
      %p102 = por %p100, %p101
      %p103 = scmp.ne.s32.totalorder %s91, %s92
      %p104 = scmp.eq.s32.totalorder %s40, 1
      %p105 = por %p103, %p104
      %p107 = scmp.ne.s32.totalorder %s92, %s106
      %p108 = scmp.eq.s32.totalorder %s40, 0
      %p109 = por %p107, %p108
      %s111 = sadd.s32 %s110, 1
      %p114 = scmp.eq.s32.totalorder %s34, 1
      %p115 = scmp.ne.s32.totalorder %s110, %s112
      %p116 = scmp.eq.s32.totalorder %s34, 0
      %p117 = por %p115, %p116
      %p118 = scmp.ne.s32.totalorder %s110, %s112
      %p119 = scmp.eq.s32.totalorder %s39, 1
      %p120 = por %p118, %p119
      %p121 = scmp.ne.s32.totalorder %s112, %s113
      %p122 = scmp.eq.s32.totalorder %s39, 0
      %p123 = por %p121, %p122
      %p124 = scmp.ne.s32.totalorder %s112, %s113
      %p125 = scmp.eq.s32.totalorder %s40, 1
      %p126 = por %p124, %p125
      %p128 = scmp.ne.s32.totalorder %s113, %s127
      %p129 = scmp.eq.s32.totalorder %s40, 0
      %p130 = por %p128, %p129
      %s132 = sadd.s32 %s131, 1
      %p135 = scmp.eq.s32.totalorder %s34, 1
      %p136 = scmp.ne.s32.totalorder %s131, %s133
      %p137 = scmp.eq.s32.totalorder %s34, 0
      %p138 = por %p136, %p137
      %p139 = scmp.ne.s32.totalorder %s131, %s133
      %p140 = scmp.eq.s32.totalorder %s39, 1
      %p141 = por %p139, %p140
      %p142 = scmp.ne.s32.totalorder %s133, %s134
      %p143 = scmp.eq.s32.totalorder %s39, 0
      %p144 = por %p142, %p143
      %p145 = scmp.ne.s32.totalorder %s133, %s134
      %p146 = scmp.eq.s32.totalorder %s40, 1
      %p147 = por %p145, %p146
      %p149 = scmp.ne.s32.totalorder %s134, %s148
      %p150 = scmp.eq.s32.totalorder %s40, 0
      %p151 = por %p149, %p150
      %s152 = ssub.s32 %s34, %s41
      %p153 = scmp.eq.s32.totalorder %s152, 0
      %s155 = sadd.s32 %s154, 1
      %s156 = scalar_select %p153, %s154, %s155
      %p159 = pneg %p153
      %p160 = scmp.eq.s32.totalorder %s34, 1
      %p161 = por %p159, %p160
      %p162 = scmp.ne.s32.totalorder %s154, %s157
      %p163 = scmp.eq.s32.totalorder %s34, 0
      %p164 = por %p162, %p163
      %p165 = scmp.ne.s32.totalorder %s154, %s157
      %p166 = scmp.eq.s32.totalorder %s39, 1
      %p167 = por %p165, %p166
      %p168 = scmp.ne.s32.totalorder %s157, %s158
      %p169 = scmp.eq.s32.totalorder %s39, 0
      %p170 = por %p168, %p169
      %p171 = scmp.ne.s32.totalorder %s157, %s158
      %p172 = scmp.eq.s32.totalorder %s40, 1
      %p173 = por %p171, %p172
      %p175 = scmp.ne.s32.totalorder %s158, %s174
      %p176 = scmp.eq.s32.totalorder %s40, 0
      %p177 = por %p175, %p176
      %s179 = sadd.s32 %s178, 1
      %p182 = scmp.eq.s32.totalorder %s34, 1
      %p183 = scmp.ne.s32.totalorder %s178, %s180
      %p184 = scmp.eq.s32.totalorder %s34, 0
      %p185 = por %p183, %p184
      %p186 = scmp.ne.s32.totalorder %s178, %s180
      %p187 = scmp.eq.s32.totalorder %s39, 1
      %p188 = por %p186, %p187
      %p189 = scmp.ne.s32.totalorder %s180, %s181
      %p190 = scmp.eq.s32.totalorder %s39, 0
      %p191 = por %p189, %p190
      %p192 = scmp.ne.s32.totalorder %s180, %s181
      %p193 = scmp.eq.s32.totalorder %s40, 1
      %p194 = por %p192, %p193
      %p196 = scmp.ne.s32.totalorder %s181, %s195
      %p197 = scmp.eq.s32.totalorder %s40, 0
      %p198 = por %p196, %p197
      %s200 = sadd.s32 %s199, 1
      %p203 = scmp.eq.s32.totalorder %s34, 1
      %p204 = scmp.ne.s32.totalorder %s199, %s201
      %p205 = scmp.eq.s32.totalorder %s34, 0
      %p206 = por %p204, %p205
      %p207 = scmp.ne.s32.totalorder %s199, %s201
      %p208 = scmp.eq.s32.totalorder %s39, 1
      %p209 = por %p207, %p208
      %p210 = scmp.ne.s32.totalorder %s201, %s202
      %p211 = scmp.eq.s32.totalorder %s39, 0
      %p212 = por %p210, %p211
      %p213 = scmp.ne.s32.totalorder %s201, %s202
      %p214 = scmp.eq.s32.totalorder %s40, 1
      %p215 = por %p213, %p214
      %p217 = scmp.ne.s32.totalorder %s202, %s216
      %p218 = scmp.eq.s32.totalorder %s40, 0
      %p219 = por %p217, %p218
      %s221 = sadd.s32 %s220, 1
      %p224 = scmp.eq.s32.totalorder %s34, 1
      %p225 = scmp.ne.s32.totalorder %s220, %s222
      %p226 = scmp.eq.s32.totalorder %s34, 0
      %p227 = por %p225, %p226
      %p228 = scmp.ne.s32.totalorder %s220, %s222
      %p229 = scmp.eq.s32.totalorder %s39, 1
      %p230 = por %p228, %p229
      %p231 = scmp.ne.s32.totalorder %s222, %s223
      %p232 = scmp.eq.s32.totalorder %s39, 0
      %p233 = por %p231, %p232
      %p234 = scmp.ne.s32.totalorder %s222, %s223
      %p235 = scmp.eq.s32.totalorder %s40, 1
      %p236 = por %p234, %p235
      %p238 = scmp.ne.s32.totalorder %s223, %s237
      %p239 = scmp.eq.s32.totalorder %s40, 0
      %p240 = por %p238, %p239
      %s242 = sadd.s32 %s241, 1
      %p245 = scmp.eq.s32.totalorder %s34, 1
      %p246 = scmp.ne.s32.totalorder %s241, %s243
      %p247 = scmp.eq.s32.totalorder %s34, 0
      %p248 = por %p246, %p247
      %p249 = scmp.ne.s32.totalorder %s241, %s243
      %p250 = scmp.eq.s32.totalorder %s39, 1
      %p251 = por %p249, %p250
      %p252 = scmp.ne.s32.totalorder %s243, %s244
      %p253 = scmp.eq.s32.totalorder %s39, 0
      %p254 = por %p252, %p253
      %p255 = scmp.ne.s32.totalorder %s243, %s244
      %p256 = scmp.eq.s32.totalorder %s40, 1
      %p257 = por %p255, %p256
      %p259 = scmp.ne.s32.totalorder %s244, %s258
      %p260 = scmp.eq.s32.totalorder %s40, 0
      %p261 = por %p259, %p260
      %s262 = ssub.s32 %s34, %s41
      %p263 = scmp.eq.s32.totalorder %s262, 0
      %s265 = sadd.s32 %s264, 1
      %s266 = scalar_select %p263, %s264, %s265
      %p269 = pneg %p263
      %p270 = scmp.eq.s32.totalorder %s34, 1
      %p271 = por %p269, %p270
      %p272 = scmp.ne.s32.totalorder %s264, %s267
      %p273 = scmp.eq.s32.totalorder %s34, 0
      %p274 = por %p272, %p273
      %p275 = scmp.ne.s32.totalorder %s264, %s267
      %p276 = scmp.eq.s32.totalorder %s39, 1
      %p277 = por %p275, %p276
      %p278 = scmp.ne.s32.totalorder %s267, %s268
      %p279 = scmp.eq.s32.totalorder %s39, 0
      %p280 = por %p278, %p279
      %p281 = scmp.ne.s32.totalorder %s267, %s268
      %p282 = scmp.eq.s32.totalorder %s40, 1
      %p283 = por %p281, %p282
      %p285 = scmp.ne.s32.totalorder %s268, %s284
      %p286 = scmp.eq.s32.totalorder %s40, 0
      %p287 = por %p285, %p286
      %s288 = ssub.s32 %s34, %s41
      %p289 = scmp.eq.s32.totalorder %s288, 0
      %s291 = sadd.s32 %s290, 1
      %s292 = scalar_select %p289, %s290, %s291
      %p295 = pneg %p289
      %p296 = scmp.eq.s32.totalorder %s34, 1
      %p297 = por %p295, %p296
      %p298 = scmp.ne.s32.totalorder %s290, %s293
      %p299 = scmp.eq.s32.totalorder %s34, 0
      %p300 = por %p298, %p299
      %p301 = scmp.ne.s32.totalorder %s290, %s293
      %p302 = scmp.eq.s32.totalorder %s39, 1
      %p303 = por %p301, %p302
      %p304 = scmp.ne.s32.totalorder %s293, %s294
      %p305 = scmp.eq.s32.totalorder %s39, 0
      %p306 = por %p304, %p305
      %p307 = scmp.ne.s32.totalorder %s293, %s294
      %p308 = scmp.eq.s32.totalorder %s40, 1
      %p309 = por %p307, %p308
      %p311 = scmp.ne.s32.totalorder %s294, %s310
      %p312 = scmp.eq.s32.totalorder %s40, 0
      %p313 = por %p311, %p312
      %p314 = scmp.le.s32.totalorder 1, %s34
      %p315 = scmp.lt.s32.totalorder %s34, 3
      %p316 = pnand %p314, %p315
      %p317 = pneg %p316
      // Predicated region
      $region9: #{tpu_custom_call.1} parent=5 // pred_check
        _
      $region10: #{tpu_custom_call.1} parent=5 // pred_check_branch
        %319 = sbr.rel (%p316) target = $region12
      $region11: #{tpu_custom_call.1} parent=5 // pred_region
        %s320 = ssub.s32 %s34, 1
        // Predicated region
        $region13: #{tpu_custom_call.1} parent=11 // pred_check
          %p321 = pneg %p81
        $region14: #{tpu_custom_call.1} parent=11 // pred_check_branch
          %323 = sbr.rel (%p321) target = $region16
        $region15: #{tpu_custom_call.1} parent=11 // pred_region
          %s325 = ssub.s32 2048, 2048
          %326 = vsyncadd [#allocation6], %s325
          %s327 = sshll.u32 [#allocation5], 4
          %s328 = int_to_ptr.vmem [resolvable:$true] %s327
          %333 = dma.hbm_to_vmem [thread:$0]  %s1, 2048, %s328, [#allocation6], 64, 64, 4
        $region16: #{tpu_custom_call.1} parent=11 // pred_fallthru
          _
        // Predicated region
        $region17: #{tpu_custom_call.1} parent=11 // pred_check
          %p334 = pneg %p102
        $region18: #{tpu_custom_call.1} parent=11 // pred_check_branch
          %336 = sbr.rel (%p334) target = $region20
        $region19: #{tpu_custom_call.1} parent=11 // pred_region
          %s338 = ssub.s32 16, 16
          %339 = vsyncadd [#allocation6], %s338
          %s341 = sshll.u32 [#allocation7], 4
          %s342 = int_to_ptr.vmem [resolvable:$true] %s341
          %344 = dma.hbm_to_vmem [thread:$0]  %s2, 16, %s342, [#allocation6]
        $region20: #{tpu_custom_call.1} parent=11 // pred_fallthru
          _
        // Predicated region
        $region21: #{tpu_custom_call.1} parent=11 // pred_check
          %p345 = pneg %p123
        $region22: #{tpu_custom_call.1} parent=11 // pred_check_branch
          %347 = sbr.rel (%p345) target = $region24
        $region23: #{tpu_custom_call.1} parent=11 // pred_region
          %s349 = ssub.s32 2048, 2048
          %350 = vsyncadd [#allocation9], %s349
          %s351 = sshll.u32 [#allocation8], 4
          %s352 = int_to_ptr.vmem [resolvable:$true] %s351
          %357 = dma.hbm_to_vmem [thread:$0]  %s3, 2048, %s352, [#allocation9], 128, 128, 8
        $region24: #{tpu_custom_call.1} parent=11 // pred_fallthru
          _
        // Predicated region
        $region25: #{tpu_custom_call.1} parent=11 // pred_check
          %p358 = pneg %p144
        $region26: #{tpu_custom_call.1} parent=11 // pred_check_branch
          %360 = sbr.rel (%p358) target = $region28
        $region27: #{tpu_custom_call.1} parent=11 // pred_region
          %s362 = ssub.s32 32, 32
          %363 = vsyncadd [#allocation9], %s362
          %s365 = sshll.u32 [#allocation10], 4
          %s366 = int_to_ptr.vmem [resolvable:$true] %s365
          %368 = dma.hbm_to_vmem [thread:$0]  %s4, 32, %s366, [#allocation9]
        $region28: #{tpu_custom_call.1} parent=11 // pred_fallthru
          _
        // Predicated region
        $region29: #{tpu_custom_call.1} parent=11 // pred_check
          %p369 = pneg %p191
        $region30: #{tpu_custom_call.1} parent=11 // pred_check_branch
          %371 = sbr.rel (%p369) target = $region32
        $region31: #{tpu_custom_call.1} parent=11 // pred_region
          %s373 = ssub.s32 1024, 1024
          %374 = vsyncadd [#allocation12], %s373
          %s375 = sshll.u32 [#allocation13], 4
          %s376 = int_to_ptr.vmem [resolvable:$true] %s375
          %381 = dma.hbm_to_vmem [thread:$0]  %s6, 1024, %s376, [#allocation12], 64, 64, 4
        $region32: #{tpu_custom_call.1} parent=11 // pred_fallthru
          _
        // Predicated region
        $region33: #{tpu_custom_call.1} parent=11 // pred_check
          %p382 = pneg %p212
        $region34: #{tpu_custom_call.1} parent=11 // pred_check_branch
          %384 = sbr.rel (%p382) target = $region36
        $region35: #{tpu_custom_call.1} parent=11 // pred_region
          %s386 = ssub.s32 16, 16
          %387 = vsyncadd [#allocation15], %s386
          %s389 = sshll.u32 [#allocation14], 4
          %s390 = int_to_ptr.vmem [resolvable:$true] %s389
          %392 = dma.hbm_to_vmem [thread:$0]  %s7, 16, %s390, [#allocation15]
        $region36: #{tpu_custom_call.1} parent=11 // pred_fallthru
          _
        // Predicated region
        $region37: #{tpu_custom_call.1} parent=11 // pred_check
          %p393 = pneg %p233
        $region38: #{tpu_custom_call.1} parent=11 // pred_check_branch
          %395 = sbr.rel (%p393) target = $region40
        $region39: #{tpu_custom_call.1} parent=11 // pred_region
          %s397 = ssub.s32 2048, 2048
          %398 = vsyncadd [#allocation15], %s397
          %s399 = sshll.u32 [#allocation16], 4
          %s400 = int_to_ptr.vmem [resolvable:$true] %s399
          %405 = dma.hbm_to_vmem [thread:$0]  %s8, 2048, %s400, [#allocation15], 128, 128, 8
        $region40: #{tpu_custom_call.1} parent=11 // pred_fallthru
          _
        // Predicated region
        $region41: #{tpu_custom_call.1} parent=11 // pred_check
          %p406 = pneg %p254
        $region42: #{tpu_custom_call.1} parent=11 // pred_check_branch
          %408 = sbr.rel (%p406) target = $region44
        $region43: #{tpu_custom_call.1} parent=11 // pred_region
          %s410 = ssub.s32 32, 32
          %411 = vsyncadd [#allocation18], %s410
          %s413 = sshll.u32 [#allocation17], 4
          %s414 = int_to_ptr.vmem [resolvable:$true] %s413
          %416 = dma.hbm_to_vmem [thread:$0]  %s9, 32, %s414, [#allocation18]
        $region44: #{tpu_custom_call.1} parent=11 // pred_fallthru
          _
      $region12: #{tpu_custom_call.1} parent=5 // pred_fallthru
        _
      %p417 = scmp.lt.s32.totalorder %s34, 2
      // Predicated region
      $region45: #{tpu_custom_call.1} parent=5 // pred_check
        %p418 = pneg %p417
      $region46: #{tpu_custom_call.1} parent=5 // pred_check_branch
        %420 = sbr.rel (%p418) target = $region48
      $region47: #{tpu_custom_call.1} parent=5 // pred_region
        // Predicated region
        $region49: #{tpu_custom_call.1} parent=47 // pred_check
          %p421 = pneg %p54
        $region50: #{tpu_custom_call.1} parent=47 // pred_check_branch
          %423 = sbr.rel (%p421) target = $region52
        $region51: #{tpu_custom_call.1} parent=47 // pred_region
          %s424 = sand.u32 %s44, 1
          %s425 = scalar_lea.sflag [#allocation3], %s424
          %s426 = sand.u32 %s44, 1
          %s427 = smul.addr %s426, 256
          %s428 = scalar_lea.vmem [#allocation2], %s427
          %s429 = smul.u32 16, %s34
          %s431 = ssub.s32 4096, 4096
          %432 = vsyncadd %s425, %s431
          %s433 = smul.addr %s429, 2
          %s434 = smul.addr %s433, 128
          %s435 = scalar_lea.hbm %s0, %s434
          %s436 = sshll.u32 %s428, 4
          %s437 = int_to_ptr.vmem [resolvable:$true] %s436
          %442 = dma.hbm_to_vmem [thread:$0]  %s435, 4096, %s437, %s425, 256, 256, 16
        $region52: #{tpu_custom_call.1} parent=47 // pred_fallthru
          _
        // Predicated region
        $region53: #{tpu_custom_call.1} parent=47 // pred_check
          %p443 = pneg %p164
        $region54: #{tpu_custom_call.1} parent=47 // pred_check_branch
          %445 = sbr.rel (%p443) target = $region56
        $region55: #{tpu_custom_call.1} parent=47 // pred_region
          %s446 = sand.u32 %s34, 1
          %s447 = scalar_lea.sflag [#allocation12], %s446
          %s448 = sand.u32 %s154, 1
          %s449 = smul.addr %s448, 128
          %s450 = scalar_lea.vmem [#allocation11], %s449
          %s451 = smul.u32 16, %s34
          %s453 = ssub.s32 2048, 2048
          %454 = vsyncadd %s447, %s453
          %s455 = smul.addr %s451, 128
          %s456 = scalar_lea.hbm %s5, %s455
          %s457 = sshll.u32 %s450, 4
          %s458 = int_to_ptr.vmem [resolvable:$true] %s457
          %463 = dma.hbm_to_vmem [thread:$0]  %s456, 2048, %s458, %s447, 128, 128, 8
        $region56: #{tpu_custom_call.1} parent=47 // pred_fallthru
          _
      $region48: #{tpu_custom_call.1} parent=5 // pred_fallthru
        _
      %p464 = scmp.le.s32.totalorder 1, %s34
      %p465 = scmp.lt.s32.totalorder %s34, 3
      %p466 = pnand %p464, %p465
      %p467 = pneg %p466
      // Predicated region
      $region57: #{tpu_custom_call.1} parent=5 // pred_check
        _
      $region58: #{tpu_custom_call.1} parent=5 // pred_check_branch
        %469 = sbr.rel (%p466) target = $region60
      $region59: #{tpu_custom_call.1} parent=5 // pred_region
        %s470 = ssub.s32 %s34, 1
        %s471 = sand.u32 %s47, 1
        %s472 = scalar_lea.sflag [#allocation3], %s471
        %s473 = sand.u32 %s47, 1
        %s474 = smul.addr %s473, 256
        %s475 = scalar_lea.vmem [#allocation2], %s474
        // Predicated region
        $region61: #{tpu_custom_call.1} parent=59 // pred_check
          %p476 = pneg %p60
        $region62: #{tpu_custom_call.1} parent=59 // pred_check_branch
          %478 = sbr.rel (%p476) target = $region64
        $region63: #{tpu_custom_call.1} parent=59 // pred_region
          %479 = dma.done %s472, 4096
        $region64: #{tpu_custom_call.1} parent=59 // pred_fallthru
          _
        // Predicated region
        $region65: #{tpu_custom_call.1} parent=59 // pred_check
          %p480 = pneg %p81
        $region66: #{tpu_custom_call.1} parent=59 // pred_check_branch
          %482 = sbr.rel (%p480) target = $region68
        $region67: #{tpu_custom_call.1} parent=59 // pred_region
          %483 = dma.done [#allocation6], 2048
        $region68: #{tpu_custom_call.1} parent=59 // pred_fallthru
          _
        // Predicated region
        $region69: #{tpu_custom_call.1} parent=59 // pred_check
          %p484 = pneg %p102
        $region70: #{tpu_custom_call.1} parent=59 // pred_check_branch
          %486 = sbr.rel (%p484) target = $region72
        $region71: #{tpu_custom_call.1} parent=59 // pred_region
          %487 = dma.done [#allocation6], 16
        $region72: #{tpu_custom_call.1} parent=59 // pred_fallthru
          _
        // Predicated region
        $region73: #{tpu_custom_call.1} parent=59 // pred_check
          %p488 = pneg %p123
        $region74: #{tpu_custom_call.1} parent=59 // pred_check_branch
          %490 = sbr.rel (%p488) target = $region76
        $region75: #{tpu_custom_call.1} parent=59 // pred_region
          %491 = dma.done [#allocation9], 2048
        $region76: #{tpu_custom_call.1} parent=59 // pred_fallthru
          _
        // Predicated region
        $region77: #{tpu_custom_call.1} parent=59 // pred_check
          %p492 = pneg %p144
        $region78: #{tpu_custom_call.1} parent=59 // pred_check_branch
          %494 = sbr.rel (%p492) target = $region80
        $region79: #{tpu_custom_call.1} parent=59 // pred_region
          %495 = dma.done [#allocation9], 32
        $region80: #{tpu_custom_call.1} parent=59 // pred_fallthru
          _
        %s496 = sand.u32 %s39, 1
        %s497 = scalar_lea.sflag [#allocation12], %s496
        %s498 = sand.u32 %s157, 1
        %s499 = smul.addr %s498, 128
        %s500 = scalar_lea.vmem [#allocation11], %s499
        // Predicated region
        $region81: #{tpu_custom_call.1} parent=59 // pred_check
          %p501 = pneg %p170
        $region82: #{tpu_custom_call.1} parent=59 // pred_check_branch
          %503 = sbr.rel (%p501) target = $region84
        $region83: #{tpu_custom_call.1} parent=59 // pred_region
          %504 = dma.done %s497, 2048
        $region84: #{tpu_custom_call.1} parent=59 // pred_fallthru
          _
        // Predicated region
        $region85: #{tpu_custom_call.1} parent=59 // pred_check
          %p505 = pneg %p191
        $region86: #{tpu_custom_call.1} parent=59 // pred_check_branch
          %507 = sbr.rel (%p505) target = $region88
        $region87: #{tpu_custom_call.1} parent=59 // pred_region
          %508 = dma.done [#allocation12], 1024
        $region88: #{tpu_custom_call.1} parent=59 // pred_fallthru
          _
        // Predicated region
        $region89: #{tpu_custom_call.1} parent=59 // pred_check
          %p509 = pneg %p212
        $region90: #{tpu_custom_call.1} parent=59 // pred_check_branch
          %511 = sbr.rel (%p509) target = $region92
        $region91: #{tpu_custom_call.1} parent=59 // pred_region
          %512 = dma.done [#allocation15], 16
        $region92: #{tpu_custom_call.1} parent=59 // pred_fallthru
          _
        // Predicated region
        $region93: #{tpu_custom_call.1} parent=59 // pred_check
          %p513 = pneg %p233
        $region94: #{tpu_custom_call.1} parent=59 // pred_check_branch
          %515 = sbr.rel (%p513) target = $region96
        $region95: #{tpu_custom_call.1} parent=59 // pred_region
          %516 = dma.done [#allocation15], 2048
        $region96: #{tpu_custom_call.1} parent=59 // pred_fallthru
          _
        // Predicated region
        $region97: #{tpu_custom_call.1} parent=59 // pred_check
          %p517 = pneg %p254
        $region98: #{tpu_custom_call.1} parent=59 // pred_check_branch
          %519 = sbr.rel (%p517) target = $region100
        $region99: #{tpu_custom_call.1} parent=59 // pred_region
          %520 = dma.done [#allocation18], 32
        $region100: #{tpu_custom_call.1} parent=59 // pred_fallthru
          _
        %s521 = sand.u32 %s47, 1
        %s522 = scalar_lea.sflag [#allocation3], %s521
        %s523 = sand.u32 %s47, 1
        %s524 = smul.addr %s523, 256
        %s525 = scalar_lea.vmem [#allocation2], %s524
        %p526 = pneg %p60
        %p527 = pneg %p57
        %p528 = pneg %p81
        %p529 = pneg %p78
        %p530 = pneg %p102
        %p531 = pneg %p99
        %p532 = pneg %p123
        %p533 = pneg %p120
        %p534 = pneg %p144
        %p535 = pneg %p141
        %s536 = sand.u32 %s39, 1
        %s537 = scalar_lea.sflag [#allocation12], %s536
        %s538 = sand.u32 %s157, 1
        %s539 = smul.addr %s538, 128
        %s540 = scalar_lea.vmem [#allocation11], %s539
        %p541 = pneg %p170
        %p542 = pneg %p167
        %p543 = pneg %p191
        %p544 = pneg %p188
        %p545 = pneg %p212
        %p546 = pneg %p209
        %p547 = pneg %p233
        %p548 = pneg %p230
        %p549 = pneg %p254
        %p550 = pneg %p251
        %p551 = pneg %p280
        %p552 = pneg %p277
        %s553 = sand.u32 %s267, 1
        %s554 = scalar_lea.sflag [#allocation4], %s553
        %s555 = sand.u32 %s267, 1
        %s556 = smul.addr %s555, 256
        %s557 = scalar_lea.vmem [#allocation19], %s556
        %p558 = pneg %p306
        %p559 = pneg %p303
        %s560 = sand.u32 %s293, 1
        %s561 = scalar_lea.sflag [#allocation21], %s560
        %s562 = sand.u32 %s293, 1
        %s563 = smul.addr %s562, 256
        %s564 = scalar_lea.vmem [#allocation20], %s563
        %s565 = smul.u32 16, %s39
        %s566 = smul.u32 16, %s39
        %s567 = smul.u32 16, %s39
        %s568 = smul.u32 16, %s39
        %v570 = vld [vmem:[%s475] sm:$0xff]
        %v571 = vld [vmem:[%s475 + $0x8] sm:$0xff]
        %v572 = vld [vmem:[%s475 + $0x10] sm:$0xff]
        %v573 = vld [vmem:[%s475 + $0x18] sm:$0xff]
        %v574 = vld [vmem:[%s475 + $0x20] sm:$0xff]
        %v575 = vld [vmem:[%s475 + $0x28] sm:$0xff]
        %v576 = vld [vmem:[%s475 + $0x30] sm:$0xff]
        %v577 = vld [vmem:[%s475 + $0x38] sm:$0xff]
        %v578 = vld [vmem:[%s475 + $0x40] sm:$0xff]
        %v579 = vld [vmem:[%s475 + $0x48] sm:$0xff]
        %v580 = vld [vmem:[%s475 + $0x50] sm:$0xff]
        %v581 = vld [vmem:[%s475 + $0x58] sm:$0xff]
        %v582 = vld [vmem:[%s475 + $0x60] sm:$0xff]
        %v583 = vld [vmem:[%s475 + $0x68] sm:$0xff]
        %v584 = vld [vmem:[%s475 + $0x70] sm:$0xff]
        %v585 = vld [vmem:[%s475 + $0x78] sm:$0xff]
        %v586 = vld [vmem:[%s475 + $0x80] sm:$0xff]
        %v587 = vld [vmem:[%s475 + $0x88] sm:$0xff]
        %v588 = vld [vmem:[%s475 + $0x90] sm:$0xff]
        %v589 = vld [vmem:[%s475 + $0x98] sm:$0xff]
        %v590 = vld [vmem:[%s475 + $0xa0] sm:$0xff]
        %v591 = vld [vmem:[%s475 + $0xa8] sm:$0xff]
        %v592 = vld [vmem:[%s475 + $0xb0] sm:$0xff]
        %v593 = vld [vmem:[%s475 + $0xb8] sm:$0xff]
        %v594 = vld [vmem:[%s475 + $0xc0] sm:$0xff]
        %v595 = vld [vmem:[%s475 + $0xc8] sm:$0xff]
        %v596 = vld [vmem:[%s475 + $0xd0] sm:$0xff]
        %v597 = vld [vmem:[%s475 + $0xd8] sm:$0xff]
        %v598 = vld [vmem:[%s475 + $0xe0] sm:$0xff]
        %v599 = vld [vmem:[%s475 + $0xe8] sm:$0xff]
        %v600 = vld [vmem:[%s475 + $0xf0] sm:$0xff]
        %v601 = vld [vmem:[%s475 + $0xf8] sm:$0xff]
        %v602 = vpack.c.bf16 %v572, %v570
        %v603 = vpack.c.bf16 %v573, %v571
        %v604 = vpack.c.bf16 %v576, %v574
        %v605 = vpack.c.bf16 %v577, %v575
        %v606 = vpack.c.bf16 %v580, %v578
        %v607 = vpack.c.bf16 %v581, %v579
        %v608 = vpack.c.bf16 %v584, %v582
        %v609 = vpack.c.bf16 %v585, %v583
        %v610 = vpack.c.bf16 %v588, %v586
        %v611 = vpack.c.bf16 %v589, %v587
        %v612 = vpack.c.bf16 %v592, %v590
        %v613 = vpack.c.bf16 %v593, %v591
        %v614 = vpack.c.bf16 %v596, %v594
        %v615 = vpack.c.bf16 %v597, %v595
        %v616 = vpack.c.bf16 %v600, %v598
        %v617 = vpack.c.bf16 %v601, %v599
        %v618 = vld [vmem:[#allocation5] sm:$0xf]
        %v619 = vld [vmem:[#allocation5 + $0x4] sm:$0xf]
        %v620 = vld [vmem:[#allocation5 + $0x8] sm:$0xf]
        %v621 = vld [vmem:[#allocation5 + $0xc] sm:$0xf]
        %v622 = vld [vmem:[#allocation5 + $0x10] sm:$0xf]
        %v623 = vld [vmem:[#allocation5 + $0x14] sm:$0xf]
        %v624 = vld [vmem:[#allocation5 + $0x18] sm:$0xf]
        %v625 = vld [vmem:[#allocation5 + $0x1c] sm:$0xf]
        %v626 = vld [vmem:[#allocation5 + $0x20] sm:$0xf]
        %v627 = vld [vmem:[#allocation5 + $0x24] sm:$0xf]
        %v628 = vld [vmem:[#allocation5 + $0x28] sm:$0xf]
        %v629 = vld [vmem:[#allocation5 + $0x2c] sm:$0xf]
        %v630 = vld [vmem:[#allocation5 + $0x30] sm:$0xf]
        %v631 = vld [vmem:[#allocation5 + $0x34] sm:$0xf]
        %v632 = vld [vmem:[#allocation5 + $0x38] sm:$0xf]
        %v633 = vld [vmem:[#allocation5 + $0x3c] sm:$0xf]
        %v634 = vld [vmem:[#allocation5 + $0x40] sm:$0xf]
        %v635 = vld [vmem:[#allocation5 + $0x44] sm:$0xf]
        %v636 = vld [vmem:[#allocation5 + $0x48] sm:$0xf]
        %v637 = vld [vmem:[#allocation5 + $0x4c] sm:$0xf]
        %v638 = vld [vmem:[#allocation5 + $0x50] sm:$0xf]
        %v639 = vld [vmem:[#allocation5 + $0x54] sm:$0xf]
        %v640 = vld [vmem:[#allocation5 + $0x58] sm:$0xf]
        %v641 = vld [vmem:[#allocation5 + $0x5c] sm:$0xf]
        %v642 = vld [vmem:[#allocation5 + $0x60] sm:$0xf]
        %v643 = vld [vmem:[#allocation5 + $0x64] sm:$0xf]
        %v644 = vld [vmem:[#allocation5 + $0x68] sm:$0xf]
        %v645 = vld [vmem:[#allocation5 + $0x6c] sm:$0xf]
        %v646 = vld [vmem:[#allocation5 + $0x70] sm:$0xf]
        %v647 = vld [vmem:[#allocation5 + $0x74] sm:$0xf]
        %v648 = vld [vmem:[#allocation5 + $0x78] sm:$0xf]
        %v649 = vld [vmem:[#allocation5 + $0x7c] sm:$0xf]
        %v650 = vld [vmem:[#allocation7] sm:$0x1]
        %v652 = vlaneseq
        %v653 = vshrl.u32 %v652, 7
        %v654 = vsub.s32 0, %v653
        %v655 = vrot.slane %v650, %v654
        %v689 = vunpack.c.l.b16 %v618
        %v690 = vunpack.c.l.b16 %v619
        %v691 = vunpack.c.l.b16 %v620
        %v692 = vunpack.c.l.b16 %v621
        %v693 = vunpack.c.l.b16 %v622
        %v694 = vunpack.c.l.b16 %v623
        %v695 = vunpack.c.l.b16 %v624
        %v696 = vunpack.c.l.b16 %v625
        %v697 = vunpack.c.l.b16 %v626
        %v698 = vunpack.c.l.b16 %v627
        %v699 = vunpack.c.l.b16 %v628
        %v700 = vunpack.c.l.b16 %v629
        %v701 = vunpack.c.l.b16 %v630
        %v702 = vunpack.c.l.b16 %v631
        %v703 = vunpack.c.l.b16 %v632
        %v704 = vunpack.c.l.b16 %v633
        %v705 = vunpack.c.l.b16 %v634
        %v706 = vunpack.c.l.b16 %v635
        %v707 = vunpack.c.l.b16 %v636
        %v708 = vunpack.c.l.b16 %v637
        %v709 = vunpack.c.l.b16 %v638
        %v710 = vunpack.c.l.b16 %v639
        %v711 = vunpack.c.l.b16 %v640
        %v712 = vunpack.c.l.b16 %v641
        %v713 = vunpack.c.l.b16 %v642
        %v714 = vunpack.c.l.b16 %v643
        %v715 = vunpack.c.l.b16 %v644
        %v716 = vunpack.c.l.b16 %v645
        %v717 = vunpack.c.l.b16 %v646
        %v718 = vunpack.c.l.b16 %v647
        %v719 = vunpack.c.l.b16 %v648
        %v720 = vunpack.c.l.b16 %v649
        %v721 = vpack.c.b16 %v690, %v689
        %v722 = vpack.c.b16 %v692, %v691
        %v723 = vpack.c.b16 %v694, %v693
        %v724 = vpack.c.b16 %v696, %v695
        %v725 = vpack.c.b16 %v698, %v697
        %v726 = vpack.c.b16 %v700, %v699
        %v727 = vpack.c.b16 %v702, %v701
        %v728 = vpack.c.b16 %v704, %v703
        %v729 = vpack.c.b16 %v706, %v705
        %v730 = vpack.c.b16 %v708, %v707
        %v731 = vpack.c.b16 %v710, %v709
        %v732 = vpack.c.b16 %v712, %v711
        %v733 = vpack.c.b16 %v714, %v713
        %v734 = vpack.c.b16 %v716, %v715
        %v735 = vpack.c.b16 %v718, %v717
        %v736 = vpack.c.b16 %v720, %v719
        %753 = vmatprep.subr.bf16.mxu0 0
        %754 = vmatpush1.bf16.msra.mxu0 %v721
        %755 = vmatprep.subr.bf16.mxu0 0
        %756 = vmatpush1.bf16.msra.mxu0 %v722
        %757 = vmatprep.subr.bf16.mxu0 0
        %758 = vmatpush1.bf16.msra.mxu0 %v723
        %759 = vmatprep.subr.bf16.mxu0 0
        %760 = vmatpush1.bf16.msra.mxu0 %v724
        %761 = vmatprep.subr.bf16.mxu0 0
        %762 = vmatpush1.bf16.msra.mxu0 %v725
        %763 = vmatprep.subr.bf16.mxu0 0
        %764 = vmatpush1.bf16.msra.mxu0 %v726
        %765 = vmatprep.subr.bf16.mxu0 0
        %766 = vmatpush1.bf16.msra.mxu0 %v727
        %767 = vmatprep.subr.bf16.mxu0 0
        %768 = vmatpush1.bf16.msra.mxu0 %v728
        %769 = vmatprep.subr.bf16.mxu0 0
        %770 = vmatpush1.bf16.msra.mxu0 %v729
        %771 = vmatprep.subr.bf16.mxu0 0
        %772 = vmatpush1.bf16.msra.mxu0 %v730
        %773 = vmatprep.subr.bf16.mxu0 0
        %774 = vmatpush1.bf16.msra.mxu0 %v731
        %775 = vmatprep.subr.bf16.mxu0 0
        %776 = vmatpush1.bf16.msra.mxu0 %v732
        %777 = vmatprep.subr.bf16.mxu0 0
        %778 = vmatpush1.bf16.msra.mxu0 %v733
        %779 = vmatprep.subr.bf16.mxu0 0
        %780 = vmatpush1.bf16.msra.mxu0 %v734
        %781 = vmatprep.subr.bf16.mxu0 0
        %782 = vmatpush1.bf16.msra.mxu0 %v735
        %783 = vmatprep.subr.bf16.mxu0 0
        %784 = vmatpush1.bf16.msra.mxu0 %v736
        %785 = vmatprep.mubr.bf16.mxu0 %v603
        %786 = vmatmul.mubr.bf16.gmra.mrb[0].mxu0 %v602
        %v787 = vpop.f32.mrb[0].mxu0
        %v788 = vadd.f32 %v655, %v787
        %v789 = vpop.f32.mrb[0].mxu0
        %v790 = vpop.f32.mrb[0].mxu0
        %v791 = vadd.f32 %v655, %v790
        %v792 = vpop.f32.mrb[0].mxu0
        %793 = vmatprep.mubr.bf16.mxu0 %v605
        %794 = vmatmul.mubr.bf16.gmra.mrb[0].mxu0 %v604
        %v795 = vpop.f32.mrb[0].mxu0
        %v796 = vadd.f32 %v655, %v795
        %v797 = vpop.f32.mrb[0].mxu0
        %v798 = vpop.f32.mrb[0].mxu0
        %v799 = vadd.f32 %v655, %v798
        %v800 = vpop.f32.mrb[0].mxu0
        %801 = vmatprep.mubr.bf16.mxu0 %v607
        %802 = vmatmul.mubr.bf16.gmra.mrb[0].mxu0 %v606
        %v803 = vpop.f32.mrb[0].mxu0
        %v804 = vadd.f32 %v655, %v803
        %v805 = vpop.f32.mrb[0].mxu0
        %v806 = vpop.f32.mrb[0].mxu0
        %v807 = vadd.f32 %v655, %v806
        %v808 = vpop.f32.mrb[0].mxu0
        %809 = vmatprep.mubr.bf16.mxu0 %v609
        %810 = vmatmul.mubr.bf16.gmra.mrb[0].mxu0 %v608
        %v811 = vpop.f32.mrb[0].mxu0
        %v812 = vadd.f32 %v655, %v811
        %v813 = vpop.f32.mrb[0].mxu0
        %v814 = vpop.f32.mrb[0].mxu0
        %v815 = vadd.f32 %v655, %v814
        %v816 = vpop.f32.mrb[0].mxu0
        %817 = vmatprep.mubr.bf16.mxu0 %v611
        %818 = vmatmul.mubr.bf16.gmra.mrb[0].mxu0 %v610
        %v819 = vpop.f32.mrb[0].mxu0
        %v820 = vadd.f32 %v655, %v819
        %v821 = vpop.f32.mrb[0].mxu0
        %v822 = vpop.f32.mrb[0].mxu0
        %v823 = vadd.f32 %v655, %v822
        %v824 = vpop.f32.mrb[0].mxu0
        %825 = vmatprep.mubr.bf16.mxu0 %v613
        %826 = vmatmul.mubr.bf16.gmra.mrb[0].mxu0 %v612
        %v827 = vpop.f32.mrb[0].mxu0
        %v828 = vadd.f32 %v655, %v827
        %v829 = vpop.f32.mrb[0].mxu0
        %v830 = vpop.f32.mrb[0].mxu0
        %v831 = vadd.f32 %v655, %v830
        %v832 = vpop.f32.mrb[0].mxu0
        %833 = vmatprep.mubr.bf16.mxu0 %v615
        %834 = vmatmul.mubr.bf16.gmra.mrb[0].mxu0 %v614
        %v835 = vpop.f32.mrb[0].mxu0
        %v836 = vadd.f32 %v655, %v835
        %v837 = vpop.f32.mrb[0].mxu0
        %v838 = vpop.f32.mrb[0].mxu0
        %v839 = vadd.f32 %v655, %v838
        %v840 = vpop.f32.mrb[0].mxu0
        %841 = vmatprep.mubr.bf16.mxu0 %v617
        %842 = vmatmul.mubr.bf16.gmra.mrb[0].mxu0 %v616
        %v843 = vpop.f32.mrb[0].mxu0
        %v844 = vadd.f32 %v655, %v843
        %v845 = vpop.f32.mrb[0].mxu0
        %v846 = vpop.f32.mrb[0].mxu0
        %v847 = vadd.f32 %v655, %v846
        %v848 = vpop.f32.mrb[0].mxu0
        %849 = vdwg.mxu0
        %v850 = vmax.f32 %v788, 0.0
        %v851 = vmax.f32 %v791, 0.0
        %v852 = vmax.f32 %v796, 0.0
        %v853 = vmax.f32 %v799, 0.0
        %v854 = vmax.f32 %v804, 0.0
        %v855 = vmax.f32 %v807, 0.0
        %v856 = vmax.f32 %v812, 0.0
        %v857 = vmax.f32 %v815, 0.0
        %v858 = vmax.f32 %v820, 0.0
        %v859 = vmax.f32 %v823, 0.0
        %v860 = vmax.f32 %v828, 0.0
        %v861 = vmax.f32 %v831, 0.0
        %v862 = vmax.f32 %v836, 0.0
        %v863 = vmax.f32 %v839, 0.0
        %v864 = vmax.f32 %v844, 0.0
        %v865 = vmax.f32 %v847, 0.0
        %v866 = vpack.c.bf16 %v851, %v850
        %v867 = vpack.c.bf16 %v853, %v852
        %v868 = vpack.c.bf16 %v855, %v854
        %v869 = vpack.c.bf16 %v857, %v856
        %v870 = vpack.c.bf16 %v859, %v858
        %v871 = vpack.c.bf16 %v861, %v860
        %v872 = vpack.c.bf16 %v863, %v862
        %v873 = vpack.c.bf16 %v865, %v864
        %v874 = vld [vmem:[#allocation8] sm:$0xff]
        %v875 = vld [vmem:[#allocation8 + $0x8] sm:$0xff]
        %v876 = vld [vmem:[#allocation8 + $0x10] sm:$0xff]
        %v877 = vld [vmem:[#allocation8 + $0x18] sm:$0xff]
        %v878 = vld [vmem:[#allocation8 + $0x20] sm:$0xff]
        %v879 = vld [vmem:[#allocation8 + $0x28] sm:$0xff]
        %v880 = vld [vmem:[#allocation8 + $0x30] sm:$0xff]
        %v881 = vld [vmem:[#allocation8 + $0x38] sm:$0xff]
        %v882 = vld [vmem:[#allocation8 + $0x40] sm:$0xff]
        %v883 = vld [vmem:[#allocation8 + $0x48] sm:$0xff]
        %v884 = vld [vmem:[#allocation8 + $0x50] sm:$0xff]
        %v885 = vld [vmem:[#allocation8 + $0x58] sm:$0xff]
        %v886 = vld [vmem:[#allocation8 + $0x60] sm:$0xff]
        %v887 = vld [vmem:[#allocation8 + $0x68] sm:$0xff]
        %v888 = vld [vmem:[#allocation8 + $0x70] sm:$0xff]
        %v889 = vld [vmem:[#allocation8 + $0x78] sm:$0xff]
        %v890 = vld [vmem:[#allocation10] sm:$0x3]
        %v892 = vlaneseq
        %v893 = vshrl.u32 %v892, 7
        %v894 = vsub.s32 0, %v893
        %v895 = vrot.slane %v890, %v894
        %v896 = vlaneseq
        %v897 = vshrl.u32 %v896, 7
        %v898 = vsub.s32 1, %v897
        %v899 = vrot.slane %v890, %v898
        %v918 = vunpack.c.l.b16 %v874
        %v919 = vunpack.c.h.b16 %v874
        %v920 = vunpack.c.l.b16 %v875
        %v921 = vunpack.c.h.b16 %v875
        %v922 = vunpack.c.l.b16 %v876
        %v923 = vunpack.c.h.b16 %v876
        %v924 = vunpack.c.l.b16 %v877
        %v925 = vunpack.c.h.b16 %v877
        %v926 = vunpack.c.l.b16 %v878
        %v927 = vunpack.c.h.b16 %v878
        %v928 = vunpack.c.l.b16 %v879
        %v929 = vunpack.c.h.b16 %v879
        %v930 = vunpack.c.l.b16 %v880
        %v931 = vunpack.c.h.b16 %v880
        %v932 = vunpack.c.l.b16 %v881
        %v933 = vunpack.c.h.b16 %v881
        %v934 = vunpack.c.l.b16 %v882
        %v935 = vunpack.c.h.b16 %v882
        %v936 = vunpack.c.l.b16 %v883
        %v937 = vunpack.c.h.b16 %v883
        %v938 = vunpack.c.l.b16 %v884
        %v939 = vunpack.c.h.b16 %v884
        %v940 = vunpack.c.l.b16 %v885
        %v941 = vunpack.c.h.b16 %v885
        %v942 = vunpack.c.l.b16 %v886
        %v943 = vunpack.c.h.b16 %v886
        %v944 = vunpack.c.l.b16 %v887
        %v945 = vunpack.c.h.b16 %v887
        %v946 = vunpack.c.l.b16 %v888
        %v947 = vunpack.c.h.b16 %v888
        %v948 = vunpack.c.l.b16 %v889
        %v949 = vunpack.c.h.b16 %v889
        %v950 = vpack.c.b16 %v920, %v918
        %v951 = vpack.c.b16 %v921, %v919
        %v952 = vpack.c.b16 %v924, %v922
        %v953 = vpack.c.b16 %v925, %v923
        %v954 = vpack.c.b16 %v928, %v926
        %v955 = vpack.c.b16 %v929, %v927
        %v956 = vpack.c.b16 %v932, %v930
        %v957 = vpack.c.b16 %v933, %v931
        %v958 = vpack.c.b16 %v936, %v934
        %v959 = vpack.c.b16 %v937, %v935
        %v960 = vpack.c.b16 %v940, %v938
        %v961 = vpack.c.b16 %v941, %v939
        %v962 = vpack.c.b16 %v944, %v942
        %v963 = vpack.c.b16 %v945, %v943
        %v964 = vpack.c.b16 %v948, %v946
        %v965 = vpack.c.b16 %v949, %v947
        %982 = vmatprep.subr.bf16.mxu0 %v951
        %983 = vmatpush1.bf16.msra.mxu0 %v950
        %984 = vmatprep.subr.bf16.mxu0 %v953
        %985 = vmatpush1.bf16.msra.mxu0 %v952
        %986 = vmatprep.subr.bf16.mxu0 %v955
        %987 = vmatpush1.bf16.msra.mxu0 %v954
        %988 = vmatprep.subr.bf16.mxu0 %v957
        %989 = vmatpush1.bf16.msra.mxu0 %v956
        %990 = vmatprep.subr.bf16.mxu0 %v959
        %991 = vmatpush1.bf16.msra.mxu0 %v958
        %992 = vmatprep.subr.bf16.mxu0 %v961
        %993 = vmatpush1.bf16.msra.mxu0 %v960
        %994 = vmatprep.subr.bf16.mxu0 %v963
        %995 = vmatpush1.bf16.msra.mxu0 %v962
        %996 = vmatprep.subr.bf16.mxu0 %v965
        %997 = vmatpush1.bf16.msra.mxu0 %v964
        %998 = vmatprep.subr.bf16.mxu0 0
        %999 = vmatpush1.bf16.msra.mxu0 0
        %1000 = vmatprep.subr.bf16.mxu0 0
        %1001 = vmatpush1.bf16.msra.mxu0 0
        %1002 = vmatprep.subr.bf16.mxu0 0
        %1003 = vmatpush1.bf16.msra.mxu0 0
        %1004 = vmatprep.subr.bf16.mxu0 0
        %1005 = vmatpush1.bf16.msra.mxu0 0
        %1006 = vmatprep.subr.bf16.mxu0 0
        %1007 = vmatpush1.bf16.msra.mxu0 0
        %1008 = vmatprep.subr.bf16.mxu0 0
        %1009 = vmatpush1.bf16.msra.mxu0 0
        %1010 = vmatprep.subr.bf16.mxu0 0
        %1011 = vmatpush1.bf16.msra.mxu0 0
        %1012 = vmatprep.subr.bf16.mxu0 0
        %1013 = vmatpush1.bf16.msra.mxu0 0
        %1014 = vmatprep.mubr.bf16.mxu0 0
        %1015 = vmatmul.mubr.bf16.gmra.mrb[0].mxu0 %v866
        %v1016 = vpop.f32.mrb[0].mxu0
        %v1017 = vadd.f32 %v895, %v1016
        %v1018 = vpop.f32.mrb[0].mxu0
        %v1019 = vadd.f32 %v899, %v1018
        %v1020 = vpop.f32.mrb[0].mxu0
        %v1021 = vadd.f32 %v895, %v1020
        %v1022 = vpop.f32.mrb[0].mxu0
        %v1023 = vadd.f32 %v899, %v1022
        %1024 = vmatprep.mubr.bf16.mxu0 0
        %1025 = vmatmul.mubr.bf16.gmra.mrb[0].mxu0 %v867
        %v1026 = vpop.f32.mrb[0].mxu0
        %v1027 = vadd.f32 %v895, %v1026
        %v1028 = vpop.f32.mrb[0].mxu0
        %v1029 = vadd.f32 %v899, %v1028
        %v1030 = vpop.f32.mrb[0].mxu0
        %v1031 = vadd.f32 %v895, %v1030
        %v1032 = vpop.f32.mrb[0].mxu0
        %v1033 = vadd.f32 %v899, %v1032
        %1034 = vmatprep.mubr.bf16.mxu0 0
        %1035 = vmatmul.mubr.bf16.gmra.mrb[0].mxu0 %v868
        %v1036 = vpop.f32.mrb[0].mxu0
        %v1037 = vadd.f32 %v895, %v1036
        %v1038 = vpop.f32.mrb[0].mxu0
        %v1039 = vadd.f32 %v899, %v1038
        %v1040 = vpop.f32.mrb[0].mxu0
        %v1041 = vadd.f32 %v895, %v1040
        %v1042 = vpop.f32.mrb[0].mxu0
        %v1043 = vadd.f32 %v899, %v1042
        %1044 = vmatprep.mubr.bf16.mxu0 0
        %1045 = vmatmul.mubr.bf16.gmra.mrb[0].mxu0 %v869
        %v1046 = vpop.f32.mrb[0].mxu0
        %v1047 = vadd.f32 %v895, %v1046
        %v1048 = vpop.f32.mrb[0].mxu0
        %v1049 = vadd.f32 %v899, %v1048
        %v1050 = vpop.f32.mrb[0].mxu0
        %v1051 = vadd.f32 %v895, %v1050
        %v1052 = vpop.f32.mrb[0].mxu0
        %v1053 = vadd.f32 %v899, %v1052
        %1054 = vmatprep.mubr.bf16.mxu0 0
        %1055 = vmatmul.mubr.bf16.gmra.mrb[0].mxu0 %v870
        %v1056 = vpop.f32.mrb[0].mxu0
        %v1057 = vadd.f32 %v895, %v1056
        %v1058 = vpop.f32.mrb[0].mxu0
        %v1059 = vadd.f32 %v899, %v1058
        %v1060 = vpop.f32.mrb[0].mxu0
        %v1061 = vadd.f32 %v895, %v1060
        %v1062 = vpop.f32.mrb[0].mxu0
        %v1063 = vadd.f32 %v899, %v1062
        %1064 = vmatprep.mubr.bf16.mxu0 0
        %1065 = vmatmul.mubr.bf16.gmra.mrb[0].mxu0 %v871
        %v1066 = vpop.f32.mrb[0].mxu0
        %v1067 = vadd.f32 %v895, %v1066
        %v1068 = vpop.f32.mrb[0].mxu0
        %v1069 = vadd.f32 %v899, %v1068
        %v1070 = vpop.f32.mrb[0].mxu0
        %v1071 = vadd.f32 %v895, %v1070
        %v1072 = vpop.f32.mrb[0].mxu0
        %v1073 = vadd.f32 %v899, %v1072
        %1074 = vmatprep.mubr.bf16.mxu0 0
        %1075 = vmatmul.mubr.bf16.gmra.mrb[0].mxu0 %v872
        %v1076 = vpop.f32.mrb[0].mxu0
        %v1077 = vadd.f32 %v895, %v1076
        %v1078 = vpop.f32.mrb[0].mxu0
        %v1079 = vadd.f32 %v899, %v1078
        %v1080 = vpop.f32.mrb[0].mxu0
        %v1081 = vadd.f32 %v895, %v1080
        %v1082 = vpop.f32.mrb[0].mxu0
        %v1083 = vadd.f32 %v899, %v1082
        %1084 = vmatprep.mubr.bf16.mxu0 0
        %1085 = vmatmul.mubr.bf16.gmra.mrb[0].mxu0 %v873
        %v1086 = vpop.f32.mrb[0].mxu0
        %v1087 = vadd.f32 %v895, %v1086
        %v1088 = vpop.f32.mrb[0].mxu0
        %v1089 = vadd.f32 %v899, %v1088
        %v1090 = vpop.f32.mrb[0].mxu0
        %v1091 = vadd.f32 %v895, %v1090
        %v1092 = vpop.f32.mrb[0].mxu0
        %v1093 = vadd.f32 %v899, %v1092
        %1094 = vdwg.mxu0
        %1095 = vst [vmem:[%s564] sm:$0xff] %v1017
        %1096 = vst [vmem:[%s564 + $0x8] sm:$0xff] %v1019
        %1097 = vst [vmem:[%s564 + $0x10] sm:$0xff] %v1021
        %1098 = vst [vmem:[%s564 + $0x18] sm:$0xff] %v1023
        %1099 = vst [vmem:[%s564 + $0x20] sm:$0xff] %v1027
        %1100 = vst [vmem:[%s564 + $0x28] sm:$0xff] %v1029
        %1101 = vst [vmem:[%s564 + $0x30] sm:$0xff] %v1031
        %1102 = vst [vmem:[%s564 + $0x38] sm:$0xff] %v1033
        %1103 = vst [vmem:[%s564 + $0x40] sm:$0xff] %v1037
        %1104 = vst [vmem:[%s564 + $0x48] sm:$0xff] %v1039
        %1105 = vst [vmem:[%s564 + $0x50] sm:$0xff] %v1041
        %1106 = vst [vmem:[%s564 + $0x58] sm:$0xff] %v1043
        %1107 = vst [vmem:[%s564 + $0x60] sm:$0xff] %v1047
        %1108 = vst [vmem:[%s564 + $0x68] sm:$0xff] %v1049
        %1109 = vst [vmem:[%s564 + $0x70] sm:$0xff] %v1051
        %1110 = vst [vmem:[%s564 + $0x78] sm:$0xff] %v1053
        %1111 = vst [vmem:[%s564 + $0x80] sm:$0xff] %v1057
        %1112 = vst [vmem:[%s564 + $0x88] sm:$0xff] %v1059
        %1113 = vst [vmem:[%s564 + $0x90] sm:$0xff] %v1061
        %1114 = vst [vmem:[%s564 + $0x98] sm:$0xff] %v1063
        %1115 = vst [vmem:[%s564 + $0xa0] sm:$0xff] %v1067
        %1116 = vst [vmem:[%s564 + $0xa8] sm:$0xff] %v1069
        %1117 = vst [vmem:[%s564 + $0xb0] sm:$0xff] %v1071
        %1118 = vst [vmem:[%s564 + $0xb8] sm:$0xff] %v1073
        %1119 = vst [vmem:[%s564 + $0xc0] sm:$0xff] %v1077
        %1120 = vst [vmem:[%s564 + $0xc8] sm:$0xff] %v1079
        %1121 = vst [vmem:[%s564 + $0xd0] sm:$0xff] %v1081
        %1122 = vst [vmem:[%s564 + $0xd8] sm:$0xff] %v1083
        %1123 = vst [vmem:[%s564 + $0xe0] sm:$0xff] %v1087
        %1124 = vst [vmem:[%s564 + $0xe8] sm:$0xff] %v1089
        %1125 = vst [vmem:[%s564 + $0xf0] sm:$0xff] %v1091
        %1126 = vst [vmem:[%s564 + $0xf8] sm:$0xff] %v1093
        %v1127 = vld [vmem:[%s500] sm:$0xff]
        %v1128 = vld [vmem:[%s500 + $0x8] sm:$0xff]
        %v1129 = vld [vmem:[%s500 + $0x10] sm:$0xff]
        %v1130 = vld [vmem:[%s500 + $0x18] sm:$0xff]
        %v1131 = vld [vmem:[%s500 + $0x20] sm:$0xff]
        %v1132 = vld [vmem:[%s500 + $0x28] sm:$0xff]
        %v1133 = vld [vmem:[%s500 + $0x30] sm:$0xff]
        %v1134 = vld [vmem:[%s500 + $0x38] sm:$0xff]
        %v1135 = vld [vmem:[%s500 + $0x40] sm:$0xff]
        %v1136 = vld [vmem:[%s500 + $0x48] sm:$0xff]
        %v1137 = vld [vmem:[%s500 + $0x50] sm:$0xff]
        %v1138 = vld [vmem:[%s500 + $0x58] sm:$0xff]
        %v1139 = vld [vmem:[%s500 + $0x60] sm:$0xff]
        %v1140 = vld [vmem:[%s500 + $0x68] sm:$0xff]
        %v1141 = vld [vmem:[%s500 + $0x70] sm:$0xff]
        %v1142 = vld [vmem:[%s500 + $0x78] sm:$0xff]
        %v1143 = vmul.f32 %v1019, 0.5
        %v1144 = vmul.f32 %v1023, 0.5
        %v1145 = vmul.f32 %v1029, 0.5
        %v1146 = vmul.f32 %v1033, 0.5
        %v1147 = vmul.f32 %v1039, 0.5
        %v1148 = vmul.f32 %v1043, 0.5
        %v1149 = vmul.f32 %v1049, 0.5
        %v1150 = vmul.f32 %v1053, 0.5
        %v1151 = vmul.f32 %v1059, 0.5
        %v1152 = vmul.f32 %v1063, 0.5
        %v1153 = vmul.f32 %v1069, 0.5
        %v1154 = vmul.f32 %v1073, 0.5
        %v1155 = vmul.f32 %v1079, 0.5
        %v1156 = vmul.f32 %v1083, 0.5
        %v1157 = vmul.f32 %v1089, 0.5
        %v1158 = vmul.f32 %v1093, 0.5
        %v1159 = vmul.f32 %v1143, 1.442695
        %v1160 = vpow.pop %v1159
        %v1161 = vmul.f32 %v1144, 1.442695
        %v1162 = vpow.pop %v1161
        %v1163 = vmul.f32 %v1145, 1.442695
        %v1164 = vpow.pop %v1163
        %v1165 = vmul.f32 %v1146, 1.442695
        %v1166 = vpow.pop %v1165
        %v1167 = vmul.f32 %v1147, 1.442695
        %v1168 = vpow.pop %v1167
        %v1169 = vmul.f32 %v1148, 1.442695
        %v1170 = vpow.pop %v1169
        %v1171 = vmul.f32 %v1149, 1.442695
        %v1172 = vpow.pop %v1171
        %v1173 = vmul.f32 %v1150, 1.442695
        %v1174 = vpow.pop %v1173
        %v1175 = vmul.f32 %v1151, 1.442695
        %v1176 = vpow.pop %v1175
        %v1177 = vmul.f32 %v1152, 1.442695
        %v1178 = vpow.pop %v1177
        %v1179 = vmul.f32 %v1153, 1.442695
        %v1180 = vpow.pop %v1179
        %v1181 = vmul.f32 %v1154, 1.442695
        %v1182 = vpow.pop %v1181
        %v1183 = vmul.f32 %v1155, 1.442695
        %v1184 = vpow.pop %v1183
        %v1185 = vmul.f32 %v1156, 1.442695
        %v1186 = vpow.pop %v1185
        %v1187 = vmul.f32 %v1157, 1.442695
        %v1188 = vpow.pop %v1187
        %v1189 = vmul.f32 %v1158, 1.442695
        %v1190 = vpow.pop %v1189
        %v1191 = vmul.f32 %v1127, %v1160
        %v1192 = vmul.f32 %v1128, %v1162
        %v1193 = vmul.f32 %v1129, %v1164
        %v1194 = vmul.f32 %v1130, %v1166
        %v1195 = vmul.f32 %v1131, %v1168
        %v1196 = vmul.f32 %v1132, %v1170
        %v1197 = vmul.f32 %v1133, %v1172
        %v1198 = vmul.f32 %v1134, %v1174
        %v1199 = vmul.f32 %v1135, %v1176
        %v1200 = vmul.f32 %v1136, %v1178
        %v1201 = vmul.f32 %v1137, %v1180
        %v1202 = vmul.f32 %v1138, %v1182
        %v1203 = vmul.f32 %v1139, %v1184
        %v1204 = vmul.f32 %v1140, %v1186
        %v1205 = vmul.f32 %v1141, %v1188
        %v1206 = vmul.f32 %v1142, %v1190
        %v1207 = vadd.f32 %v1017, %v1191
        %v1208 = vadd.f32 %v1021, %v1192
        %v1209 = vadd.f32 %v1027, %v1193
        %v1210 = vadd.f32 %v1031, %v1194
        %v1211 = vadd.f32 %v1037, %v1195
        %v1212 = vadd.f32 %v1041, %v1196
        %v1213 = vadd.f32 %v1047, %v1197
        %v1214 = vadd.f32 %v1051, %v1198
        %v1215 = vadd.f32 %v1057, %v1199
        %v1216 = vadd.f32 %v1061, %v1200
        %v1217 = vadd.f32 %v1067, %v1201
        %v1218 = vadd.f32 %v1071, %v1202
        %v1219 = vadd.f32 %v1077, %v1203
        %v1220 = vadd.f32 %v1081, %v1204
        %v1221 = vadd.f32 %v1087, %v1205
        %v1222 = vadd.f32 %v1091, %v1206
        %v1223 = vpack.c.bf16 %v1208, %v1207
        %v1224 = vpack.c.bf16 %v1210, %v1209
        %v1225 = vpack.c.bf16 %v1212, %v1211
        %v1226 = vpack.c.bf16 %v1214, %v1213
        %v1227 = vpack.c.bf16 %v1216, %v1215
        %v1228 = vpack.c.bf16 %v1218, %v1217
        %v1229 = vpack.c.bf16 %v1220, %v1219
        %v1230 = vpack.c.bf16 %v1222, %v1221
        %v1231 = vld [vmem:[#allocation13] sm:$0xf]
        %v1232 = vld [vmem:[#allocation13 + $0x4] sm:$0xf]
        %v1233 = vld [vmem:[#allocation13 + $0x8] sm:$0xf]
        %v1234 = vld [vmem:[#allocation13 + $0xc] sm:$0xf]
        %v1235 = vld [vmem:[#allocation13 + $0x10] sm:$0xf]
        %v1236 = vld [vmem:[#allocation13 + $0x14] sm:$0xf]
        %v1237 = vld [vmem:[#allocation13 + $0x18] sm:$0xf]
        %v1238 = vld [vmem:[#allocation13 + $0x1c] sm:$0xf]
        %v1239 = vld [vmem:[#allocation13 + $0x20] sm:$0xf]
        %v1240 = vld [vmem:[#allocation13 + $0x24] sm:$0xf]
        %v1241 = vld [vmem:[#allocation13 + $0x28] sm:$0xf]
        %v1242 = vld [vmem:[#allocation13 + $0x2c] sm:$0xf]
        %v1243 = vld [vmem:[#allocation13 + $0x30] sm:$0xf]
        %v1244 = vld [vmem:[#allocation13 + $0x34] sm:$0xf]
        %v1245 = vld [vmem:[#allocation13 + $0x38] sm:$0xf]
        %v1246 = vld [vmem:[#allocation13 + $0x3c] sm:$0xf]
        %v1247 = vld [vmem:[#allocation14] sm:$0x1]
        %v1249 = vlaneseq
        %v1250 = vshrl.u32 %v1249, 7
        %v1251 = vsub.s32 0, %v1250
        %v1252 = vrot.slane %v1247, %v1251
        %v1270 = vunpack.c.l.b16 %v1231
        %v1271 = vunpack.c.l.b16 %v1232
        %v1272 = vunpack.c.l.b16 %v1233
        %v1273 = vunpack.c.l.b16 %v1234
        %v1274 = vunpack.c.l.b16 %v1235
        %v1275 = vunpack.c.l.b16 %v1236
        %v1276 = vunpack.c.l.b16 %v1237
        %v1277 = vunpack.c.l.b16 %v1238
        %v1278 = vunpack.c.l.b16 %v1239
        %v1279 = vunpack.c.l.b16 %v1240
        %v1280 = vunpack.c.l.b16 %v1241
        %v1281 = vunpack.c.l.b16 %v1242
        %v1282 = vunpack.c.l.b16 %v1243
        %v1283 = vunpack.c.l.b16 %v1244
        %v1284 = vunpack.c.l.b16 %v1245
        %v1285 = vunpack.c.l.b16 %v1246
        %v1286 = vpack.c.b16 %v1271, %v1270
        %v1287 = vpack.c.b16 %v1273, %v1272
        %v1288 = vpack.c.b16 %v1275, %v1274
        %v1289 = vpack.c.b16 %v1277, %v1276
        %v1290 = vpack.c.b16 %v1279, %v1278
        %v1291 = vpack.c.b16 %v1281, %v1280
        %v1292 = vpack.c.b16 %v1283, %v1282
        %v1293 = vpack.c.b16 %v1285, %v1284
        %1302 = vmatprep.subr.bf16.mxu0 0
        %1303 = vmatpush1.bf16.msra.mxu0 %v1286
        %1304 = vmatprep.subr.bf16.mxu0 0
        %1305 = vmatpush1.bf16.msra.mxu0 %v1287
        %1306 = vmatprep.subr.bf16.mxu0 0
        %1307 = vmatpush1.bf16.msra.mxu0 %v1288
        %1308 = vmatprep.subr.bf16.mxu0 0
        %1309 = vmatpush1.bf16.msra.mxu0 %v1289
        %1310 = vmatprep.subr.bf16.mxu0 0
        %1311 = vmatpush1.bf16.msra.mxu0 %v1290
        %1312 = vmatprep.subr.bf16.mxu0 0
        %1313 = vmatpush1.bf16.msra.mxu0 %v1291
        %1314 = vmatprep.subr.bf16.mxu0 0
        %1315 = vmatpush1.bf16.msra.mxu0 %v1292
        %1316 = vmatprep.subr.bf16.mxu0 0
        %1317 = vmatpush1.bf16.msra.mxu0 %v1293
        %1318 = vmatprep.subr.bf16.mxu0 0
        %1319 = vmatpush1.bf16.msra.mxu0 0
        %1320 = vmatprep.subr.bf16.mxu0 0
        %1321 = vmatpush1.bf16.msra.mxu0 0
        %1322 = vmatprep.subr.bf16.mxu0 0
        %1323 = vmatpush1.bf16.msra.mxu0 0
        %1324 = vmatprep.subr.bf16.mxu0 0
        %1325 = vmatpush1.bf16.msra.mxu0 0
        %1326 = vmatprep.subr.bf16.mxu0 0
        %1327 = vmatpush1.bf16.msra.mxu0 0
        %1328 = vmatprep.subr.bf16.mxu0 0
        %1329 = vmatpush1.bf16.msra.mxu0 0
        %1330 = vmatprep.subr.bf16.mxu0 0
        %1331 = vmatpush1.bf16.msra.mxu0 0
        %1332 = vmatprep.subr.bf16.mxu0 0
        %1333 = vmatpush1.bf16.msra.mxu0 0
        %1334 = vmatprep.mubr.bf16.mxu0 0
        %1335 = vmatmul.mubr.bf16.gmra.mrb[0].mxu0 %v1223
        %v1336 = vpop.f32.mrb[0].mxu0
        %v1337 = vadd.f32 %v1252, %v1336
        %v1338 = vpop.f32.mrb[0].mxu0
        %v1339 = vpop.f32.mrb[0].mxu0
        %v1340 = vadd.f32 %v1252, %v1339
        %v1341 = vpop.f32.mrb[0].mxu0
        %1342 = vmatprep.mubr.bf16.mxu0 0
        %1343 = vmatmul.mubr.bf16.gmra.mrb[0].mxu0 %v1224
        %v1344 = vpop.f32.mrb[0].mxu0
        %v1345 = vadd.f32 %v1252, %v1344
        %v1346 = vpop.f32.mrb[0].mxu0
        %v1347 = vpop.f32.mrb[0].mxu0
        %v1348 = vadd.f32 %v1252, %v1347
        %v1349 = vpop.f32.mrb[0].mxu0
        %1350 = vmatprep.mubr.bf16.mxu0 0
        %1351 = vmatmul.mubr.bf16.gmra.mrb[0].mxu0 %v1225
        %v1352 = vpop.f32.mrb[0].mxu0
        %v1353 = vadd.f32 %v1252, %v1352
        %v1354 = vpop.f32.mrb[0].mxu0
        %v1355 = vpop.f32.mrb[0].mxu0
        %v1356 = vadd.f32 %v1252, %v1355
        %v1357 = vpop.f32.mrb[0].mxu0
        %1358 = vmatprep.mubr.bf16.mxu0 0
        %1359 = vmatmul.mubr.bf16.gmra.mrb[0].mxu0 %v1226
        %v1360 = vpop.f32.mrb[0].mxu0
        %v1361 = vadd.f32 %v1252, %v1360
        %v1362 = vpop.f32.mrb[0].mxu0
        %v1363 = vpop.f32.mrb[0].mxu0
        %v1364 = vadd.f32 %v1252, %v1363
        %v1365 = vpop.f32.mrb[0].mxu0
        %1366 = vmatprep.mubr.bf16.mxu0 0
        %1367 = vmatmul.mubr.bf16.gmra.mrb[0].mxu0 %v1227
        %v1368 = vpop.f32.mrb[0].mxu0
        %v1369 = vadd.f32 %v1252, %v1368
        %v1370 = vpop.f32.mrb[0].mxu0
        %v1371 = vpop.f32.mrb[0].mxu0
        %v1372 = vadd.f32 %v1252, %v1371
        %v1373 = vpop.f32.mrb[0].mxu0
        %1374 = vmatprep.mubr.bf16.mxu0 0
        %1375 = vmatmul.mubr.bf16.gmra.mrb[0].mxu0 %v1228
        %v1376 = vpop.f32.mrb[0].mxu0
        %v1377 = vadd.f32 %v1252, %v1376
        %v1378 = vpop.f32.mrb[0].mxu0
        %v1379 = vpop.f32.mrb[0].mxu0
        %v1380 = vadd.f32 %v1252, %v1379
        %v1381 = vpop.f32.mrb[0].mxu0
        %1382 = vmatprep.mubr.bf16.mxu0 0
        %1383 = vmatmul.mubr.bf16.gmra.mrb[0].mxu0 %v1229
        %v1384 = vpop.f32.mrb[0].mxu0
        %v1385 = vadd.f32 %v1252, %v1384
        %v1386 = vpop.f32.mrb[0].mxu0
        %v1387 = vpop.f32.mrb[0].mxu0
        %v1388 = vadd.f32 %v1252, %v1387
        %v1389 = vpop.f32.mrb[0].mxu0
        %1390 = vmatprep.mubr.bf16.mxu0 0
        %1391 = vmatmul.mubr.bf16.gmra.mrb[0].mxu0 %v1230
        %v1392 = vpop.f32.mrb[0].mxu0
        %v1393 = vadd.f32 %v1252, %v1392
        %v1394 = vpop.f32.mrb[0].mxu0
        %v1395 = vpop.f32.mrb[0].mxu0
        %v1396 = vadd.f32 %v1252, %v1395
        %v1397 = vpop.f32.mrb[0].mxu0
        %1398 = vdwg.mxu0
        %v1399 = vmax.f32 %v1337, 0.0
        %v1400 = vmax.f32 %v1340, 0.0
        %v1401 = vmax.f32 %v1345, 0.0
        %v1402 = vmax.f32 %v1348, 0.0
        %v1403 = vmax.f32 %v1353, 0.0
        %v1404 = vmax.f32 %v1356, 0.0
        %v1405 = vmax.f32 %v1361, 0.0
        %v1406 = vmax.f32 %v1364, 0.0
        %v1407 = vmax.f32 %v1369, 0.0
        %v1408 = vmax.f32 %v1372, 0.0
        %v1409 = vmax.f32 %v1377, 0.0
        %v1410 = vmax.f32 %v1380, 0.0
        %v1411 = vmax.f32 %v1385, 0.0
        %v1412 = vmax.f32 %v1388, 0.0
        %v1413 = vmax.f32 %v1393, 0.0
        %v1414 = vmax.f32 %v1396, 0.0
        %v1415 = vpack.c.bf16 %v1400, %v1399
        %v1416 = vpack.c.bf16 %v1402, %v1401
        %v1417 = vpack.c.bf16 %v1404, %v1403
        %v1418 = vpack.c.bf16 %v1406, %v1405
        %v1419 = vpack.c.bf16 %v1408, %v1407
        %v1420 = vpack.c.bf16 %v1410, %v1409
        %v1421 = vpack.c.bf16 %v1412, %v1411
        %v1422 = vpack.c.bf16 %v1414, %v1413
        %v1423 = vld [vmem:[#allocation16] sm:$0xff]
        %v1424 = vld [vmem:[#allocation16 + $0x8] sm:$0xff]
        %v1425 = vld [vmem:[#allocation16 + $0x10] sm:$0xff]
        %v1426 = vld [vmem:[#allocation16 + $0x18] sm:$0xff]
        %v1427 = vld [vmem:[#allocation16 + $0x20] sm:$0xff]
        %v1428 = vld [vmem:[#allocation16 + $0x28] sm:$0xff]
        %v1429 = vld [vmem:[#allocation16 + $0x30] sm:$0xff]
        %v1430 = vld [vmem:[#allocation16 + $0x38] sm:$0xff]
        %v1431 = vld [vmem:[#allocation16 + $0x40] sm:$0xff]
        %v1432 = vld [vmem:[#allocation16 + $0x48] sm:$0xff]
        %v1433 = vld [vmem:[#allocation16 + $0x50] sm:$0xff]
        %v1434 = vld [vmem:[#allocation16 + $0x58] sm:$0xff]
        %v1435 = vld [vmem:[#allocation16 + $0x60] sm:$0xff]
        %v1436 = vld [vmem:[#allocation16 + $0x68] sm:$0xff]
        %v1437 = vld [vmem:[#allocation16 + $0x70] sm:$0xff]
        %v1438 = vld [vmem:[#allocation16 + $0x78] sm:$0xff]
        %v1439 = vld [vmem:[#allocation17] sm:$0x3]
        %v1441 = vlaneseq
        %v1442 = vshrl.u32 %v1441, 7
        %v1443 = vsub.s32 0, %v1442
        %v1444 = vrot.slane %v1439, %v1443
        %v1445 = vlaneseq
        %v1446 = vshrl.u32 %v1445, 7
        %v1447 = vsub.s32 1, %v1446
        %v1448 = vrot.slane %v1439, %v1447
        %v1467 = vunpack.c.l.b16 %v1423
        %v1468 = vunpack.c.h.b16 %v1423
        %v1469 = vunpack.c.l.b16 %v1424
        %v1470 = vunpack.c.h.b16 %v1424
        %v1471 = vunpack.c.l.b16 %v1425
        %v1472 = vunpack.c.h.b16 %v1425
        %v1473 = vunpack.c.l.b16 %v1426
        %v1474 = vunpack.c.h.b16 %v1426
        %v1475 = vunpack.c.l.b16 %v1427
        %v1476 = vunpack.c.h.b16 %v1427
        %v1477 = vunpack.c.l.b16 %v1428
        %v1478 = vunpack.c.h.b16 %v1428
        %v1479 = vunpack.c.l.b16 %v1429
        %v1480 = vunpack.c.h.b16 %v1429
        %v1481 = vunpack.c.l.b16 %v1430
        %v1482 = vunpack.c.h.b16 %v1430
        %v1483 = vunpack.c.l.b16 %v1431
        %v1484 = vunpack.c.h.b16 %v1431
        %v1485 = vunpack.c.l.b16 %v1432
        %v1486 = vunpack.c.h.b16 %v1432
        %v1487 = vunpack.c.l.b16 %v1433
        %v1488 = vunpack.c.h.b16 %v1433
        %v1489 = vunpack.c.l.b16 %v1434
        %v1490 = vunpack.c.h.b16 %v1434
        %v1491 = vunpack.c.l.b16 %v1435
        %v1492 = vunpack.c.h.b16 %v1435
        %v1493 = vunpack.c.l.b16 %v1436
        %v1494 = vunpack.c.h.b16 %v1436
        %v1495 = vunpack.c.l.b16 %v1437
        %v1496 = vunpack.c.h.b16 %v1437
        %v1497 = vunpack.c.l.b16 %v1438
        %v1498 = vunpack.c.h.b16 %v1438
        %v1499 = vpack.c.b16 %v1469, %v1467
        %v1500 = vpack.c.b16 %v1470, %v1468
        %v1501 = vpack.c.b16 %v1473, %v1471
        %v1502 = vpack.c.b16 %v1474, %v1472
        %v1503 = vpack.c.b16 %v1477, %v1475
        %v1504 = vpack.c.b16 %v1478, %v1476
        %v1505 = vpack.c.b16 %v1481, %v1479
        %v1506 = vpack.c.b16 %v1482, %v1480
        %v1507 = vpack.c.b16 %v1485, %v1483
        %v1508 = vpack.c.b16 %v1486, %v1484
        %v1509 = vpack.c.b16 %v1489, %v1487
        %v1510 = vpack.c.b16 %v1490, %v1488
        %v1511 = vpack.c.b16 %v1493, %v1491
        %v1512 = vpack.c.b16 %v1494, %v1492
        %v1513 = vpack.c.b16 %v1497, %v1495
        %v1514 = vpack.c.b16 %v1498, %v1496
        %1531 = vmatprep.subr.bf16.mxu0 %v1500
        %1532 = vmatpush1.bf16.msra.mxu0 %v1499
        %1533 = vmatprep.subr.bf16.mxu0 %v1502
        %1534 = vmatpush1.bf16.msra.mxu0 %v1501
        %1535 = vmatprep.subr.bf16.mxu0 %v1504
        %1536 = vmatpush1.bf16.msra.mxu0 %v1503
        %1537 = vmatprep.subr.bf16.mxu0 %v1506
        %1538 = vmatpush1.bf16.msra.mxu0 %v1505
        %1539 = vmatprep.subr.bf16.mxu0 %v1508
        %1540 = vmatpush1.bf16.msra.mxu0 %v1507
        %1541 = vmatprep.subr.bf16.mxu0 %v1510
        %1542 = vmatpush1.bf16.msra.mxu0 %v1509
        %1543 = vmatprep.subr.bf16.mxu0 %v1512
        %1544 = vmatpush1.bf16.msra.mxu0 %v1511
        %1545 = vmatprep.subr.bf16.mxu0 %v1514
        %1546 = vmatpush1.bf16.msra.mxu0 %v1513
        %1547 = vmatprep.subr.bf16.mxu0 0
        %1548 = vmatpush1.bf16.msra.mxu0 0
        %1549 = vmatprep.subr.bf16.mxu0 0
        %1550 = vmatpush1.bf16.msra.mxu0 0
        %1551 = vmatprep.subr.bf16.mxu0 0
        %1552 = vmatpush1.bf16.msra.mxu0 0
        %1553 = vmatprep.subr.bf16.mxu0 0
        %1554 = vmatpush1.bf16.msra.mxu0 0
        %1555 = vmatprep.subr.bf16.mxu0 0
        %1556 = vmatpush1.bf16.msra.mxu0 0
        %1557 = vmatprep.subr.bf16.mxu0 0
        %1558 = vmatpush1.bf16.msra.mxu0 0
        %1559 = vmatprep.subr.bf16.mxu0 0
        %1560 = vmatpush1.bf16.msra.mxu0 0
        %1561 = vmatprep.subr.bf16.mxu0 0
        %1562 = vmatpush1.bf16.msra.mxu0 0
        %1563 = vmatprep.mubr.bf16.mxu0 0
        %1564 = vmatmul.mubr.bf16.gmra.mrb[0].mxu0 %v1415
        %v1565 = vpop.f32.mrb[0].mxu0
        %v1566 = vadd.f32 %v1444, %v1565
        %v1567 = vpop.f32.mrb[0].mxu0
        %v1568 = vadd.f32 %v1448, %v1567
        %v1569 = vpop.f32.mrb[0].mxu0
        %v1570 = vadd.f32 %v1444, %v1569
        %v1571 = vpop.f32.mrb[0].mxu0
        %v1572 = vadd.f32 %v1448, %v1571
        %1573 = vmatprep.mubr.bf16.mxu0 0
        %1574 = vmatmul.mubr.bf16.gmra.mrb[0].mxu0 %v1416
        %v1575 = vpop.f32.mrb[0].mxu0
        %v1576 = vadd.f32 %v1444, %v1575
        %v1577 = vpop.f32.mrb[0].mxu0
        %v1578 = vadd.f32 %v1448, %v1577
        %v1579 = vpop.f32.mrb[0].mxu0
        %v1580 = vadd.f32 %v1444, %v1579
        %v1581 = vpop.f32.mrb[0].mxu0
        %v1582 = vadd.f32 %v1448, %v1581
        %1583 = vmatprep.mubr.bf16.mxu0 0
        %1584 = vmatmul.mubr.bf16.gmra.mrb[0].mxu0 %v1417
        %v1585 = vpop.f32.mrb[0].mxu0
        %v1586 = vadd.f32 %v1444, %v1585
        %v1587 = vpop.f32.mrb[0].mxu0
        %v1588 = vadd.f32 %v1448, %v1587
        %v1589 = vpop.f32.mrb[0].mxu0
        %v1590 = vadd.f32 %v1444, %v1589
        %v1591 = vpop.f32.mrb[0].mxu0
        %v1592 = vadd.f32 %v1448, %v1591
        %1593 = vmatprep.mubr.bf16.mxu0 0
        %1594 = vmatmul.mubr.bf16.gmra.mrb[0].mxu0 %v1418
        %v1595 = vpop.f32.mrb[0].mxu0
        %v1596 = vadd.f32 %v1444, %v1595
        %v1597 = vpop.f32.mrb[0].mxu0
        %v1598 = vadd.f32 %v1448, %v1597
        %v1599 = vpop.f32.mrb[0].mxu0
        %v1600 = vadd.f32 %v1444, %v1599
        %v1601 = vpop.f32.mrb[0].mxu0
        %v1602 = vadd.f32 %v1448, %v1601
        %1603 = vmatprep.mubr.bf16.mxu0 0
        %1604 = vmatmul.mubr.bf16.gmra.mrb[0].mxu0 %v1419
        %v1605 = vpop.f32.mrb[0].mxu0
        %v1606 = vadd.f32 %v1444, %v1605
        %v1607 = vpop.f32.mrb[0].mxu0
        %v1608 = vadd.f32 %v1448, %v1607
        %v1609 = vpop.f32.mrb[0].mxu0
        %v1610 = vadd.f32 %v1444, %v1609
        %v1611 = vpop.f32.mrb[0].mxu0
        %v1612 = vadd.f32 %v1448, %v1611
        %1613 = vmatprep.mubr.bf16.mxu0 0
        %1614 = vmatmul.mubr.bf16.gmra.mrb[0].mxu0 %v1420
        %v1615 = vpop.f32.mrb[0].mxu0
        %v1616 = vadd.f32 %v1444, %v1615
        %v1617 = vpop.f32.mrb[0].mxu0
        %v1618 = vadd.f32 %v1448, %v1617
        %v1619 = vpop.f32.mrb[0].mxu0
        %v1620 = vadd.f32 %v1444, %v1619
        %v1621 = vpop.f32.mrb[0].mxu0
        %v1622 = vadd.f32 %v1448, %v1621
        %1623 = vmatprep.mubr.bf16.mxu0 0
        %1624 = vmatmul.mubr.bf16.gmra.mrb[0].mxu0 %v1421
        %v1625 = vpop.f32.mrb[0].mxu0
        %v1626 = vadd.f32 %v1444, %v1625
        %v1627 = vpop.f32.mrb[0].mxu0
        %v1628 = vadd.f32 %v1448, %v1627
        %v1629 = vpop.f32.mrb[0].mxu0
        %v1630 = vadd.f32 %v1444, %v1629
        %v1631 = vpop.f32.mrb[0].mxu0
        %v1632 = vadd.f32 %v1448, %v1631
        %1633 = vmatprep.mubr.bf16.mxu0 0
        %1634 = vmatmul.mubr.bf16.gmra.mrb[0].mxu0 %v1422
        %v1635 = vpop.f32.mrb[0].mxu0
        %v1636 = vadd.f32 %v1444, %v1635
        %v1637 = vpop.f32.mrb[0].mxu0
        %v1638 = vadd.f32 %v1448, %v1637
        %v1639 = vpop.f32.mrb[0].mxu0
        %v1640 = vadd.f32 %v1444, %v1639
        %v1641 = vpop.f32.mrb[0].mxu0
        %v1642 = vadd.f32 %v1448, %v1641
        %1643 = vdwg.mxu0
        %v1644 = vsub.f32 0.0, %v1566
        %v1645 = vsub.f32 0.0, %v1568
        %v1646 = vsub.f32 0.0, %v1570
        %v1647 = vsub.f32 0.0, %v1572
        %v1648 = vsub.f32 0.0, %v1576
        %v1649 = vsub.f32 0.0, %v1578
        %v1650 = vsub.f32 0.0, %v1580
        %v1651 = vsub.f32 0.0, %v1582
        %v1652 = vsub.f32 0.0, %v1586
        %v1653 = vsub.f32 0.0, %v1588
        %v1654 = vsub.f32 0.0, %v1590
        %v1655 = vsub.f32 0.0, %v1592
        %v1656 = vsub.f32 0.0, %v1596
        %v1657 = vsub.f32 0.0, %v1598
        %v1658 = vsub.f32 0.0, %v1600
        %v1659 = vsub.f32 0.0, %v1602
        %v1660 = vsub.f32 0.0, %v1606
        %v1661 = vsub.f32 0.0, %v1608
        %v1662 = vsub.f32 0.0, %v1610
        %v1663 = vsub.f32 0.0, %v1612
        %v1664 = vsub.f32 0.0, %v1616
        %v1665 = vsub.f32 0.0, %v1618
        %v1666 = vsub.f32 0.0, %v1620
        %v1667 = vsub.f32 0.0, %v1622
        %v1668 = vsub.f32 0.0, %v1626
        %v1669 = vsub.f32 0.0, %v1628
        %v1670 = vsub.f32 0.0, %v1630
        %v1671 = vsub.f32 0.0, %v1632
        %v1672 = vsub.f32 0.0, %v1636
        %v1673 = vsub.f32 0.0, %v1638
        %v1674 = vsub.f32 0.0, %v1640
        %v1675 = vsub.f32 0.0, %v1642
        %v1676 = vmul.f32 %v1644, 1.442695
        %v1677 = vpow.pop %v1676
        %v1678 = vmul.f32 %v1645, 1.442695
        %v1679 = vpow.pop %v1678
        %v1680 = vmul.f32 %v1646, 1.442695
        %v1681 = vpow.pop %v1680
        %v1682 = vmul.f32 %v1647, 1.442695
        %v1683 = vpow.pop %v1682
        %v1684 = vmul.f32 %v1648, 1.442695
        %v1685 = vpow.pop %v1684
        %v1686 = vmul.f32 %v1649, 1.442695
        %v1687 = vpow.pop %v1686
        %v1688 = vmul.f32 %v1650, 1.442695
        %v1689 = vpow.pop %v1688
        %v1690 = vmul.f32 %v1651, 1.442695
        %v1691 = vpow.pop %v1690
        %v1692 = vmul.f32 %v1652, 1.442695
        %v1693 = vpow.pop %v1692
        %v1694 = vmul.f32 %v1653, 1.442695
        %v1695 = vpow.pop %v1694
        %v1696 = vmul.f32 %v1654, 1.442695
        %v1697 = vpow.pop %v1696
        %v1698 = vmul.f32 %v1655, 1.442695
        %v1699 = vpow.pop %v1698
        %v1700 = vmul.f32 %v1656, 1.442695
        %v1701 = vpow.pop %v1700
        %v1702 = vmul.f32 %v1657, 1.442695
        %v1703 = vpow.pop %v1702
        %v1704 = vmul.f32 %v1658, 1.442695
        %v1705 = vpow.pop %v1704
        %v1706 = vmul.f32 %v1659, 1.442695
        %v1707 = vpow.pop %v1706
        %v1708 = vmul.f32 %v1660, 1.442695
        %v1709 = vpow.pop %v1708
        %v1710 = vmul.f32 %v1661, 1.442695
        %v1711 = vpow.pop %v1710
        %v1712 = vmul.f32 %v1662, 1.442695
        %v1713 = vpow.pop %v1712
        %v1714 = vmul.f32 %v1663, 1.442695
        %v1715 = vpow.pop %v1714
        %v1716 = vmul.f32 %v1664, 1.442695
        %v1717 = vpow.pop %v1716
        %v1718 = vmul.f32 %v1665, 1.442695
        %v1719 = vpow.pop %v1718
        %v1720 = vmul.f32 %v1666, 1.442695
        %v1721 = vpow.pop %v1720
        %v1722 = vmul.f32 %v1667, 1.442695
        %v1723 = vpow.pop %v1722
        %v1724 = vmul.f32 %v1668, 1.442695
        %v1725 = vpow.pop %v1724
        %v1726 = vmul.f32 %v1669, 1.442695
        %v1727 = vpow.pop %v1726
        %v1728 = vmul.f32 %v1670, 1.442695
        %v1729 = vpow.pop %v1728
        %v1730 = vmul.f32 %v1671, 1.442695
        %v1731 = vpow.pop %v1730
        %v1732 = vmul.f32 %v1672, 1.442695
        %v1733 = vpow.pop %v1732
        %v1734 = vmul.f32 %v1673, 1.442695
        %v1735 = vpow.pop %v1734
        %v1736 = vmul.f32 %v1674, 1.442695
        %v1737 = vpow.pop %v1736
        %v1738 = vmul.f32 %v1675, 1.442695
        %v1739 = vpow.pop %v1738
        %v1740 = vadd.f32 %v1677, 1.0
        %v1741 = vadd.f32 %v1679, 1.0
        %v1742 = vadd.f32 %v1681, 1.0
        %v1743 = vadd.f32 %v1683, 1.0
        %v1744 = vadd.f32 %v1685, 1.0
        %v1745 = vadd.f32 %v1687, 1.0
        %v1746 = vadd.f32 %v1689, 1.0
        %v1747 = vadd.f32 %v1691, 1.0
        %v1748 = vadd.f32 %v1693, 1.0
        %v1749 = vadd.f32 %v1695, 1.0
        %v1750 = vadd.f32 %v1697, 1.0
        %v1751 = vadd.f32 %v1699, 1.0
        %v1752 = vadd.f32 %v1701, 1.0
        %v1753 = vadd.f32 %v1703, 1.0
        %v1754 = vadd.f32 %v1705, 1.0
        %v1755 = vadd.f32 %v1707, 1.0
        %v1756 = vadd.f32 %v1709, 1.0
        %v1757 = vadd.f32 %v1711, 1.0
        %v1758 = vadd.f32 %v1713, 1.0
        %v1759 = vadd.f32 %v1715, 1.0
        %v1760 = vadd.f32 %v1717, 1.0
        %v1761 = vadd.f32 %v1719, 1.0
        %v1762 = vadd.f32 %v1721, 1.0
        %v1763 = vadd.f32 %v1723, 1.0
        %v1764 = vadd.f32 %v1725, 1.0
        %v1765 = vadd.f32 %v1727, 1.0
        %v1766 = vadd.f32 %v1729, 1.0
        %v1767 = vadd.f32 %v1731, 1.0
        %v1768 = vadd.f32 %v1733, 1.0
        %v1769 = vadd.f32 %v1735, 1.0
        %v1770 = vadd.f32 %v1737, 1.0
        %v1771 = vadd.f32 %v1739, 1.0
        %v1772 = vrcp.pop %v1740
        %v1773 = vrcp.pop %v1741
        %v1774 = vrcp.pop %v1742
        %v1775 = vrcp.pop %v1743
        %v1776 = vrcp.pop %v1744
        %v1777 = vrcp.pop %v1745
        %v1778 = vrcp.pop %v1746
        %v1779 = vrcp.pop %v1747
        %v1780 = vrcp.pop %v1748
        %v1781 = vrcp.pop %v1749
        %v1782 = vrcp.pop %v1750
        %v1783 = vrcp.pop %v1751
        %v1784 = vrcp.pop %v1752
        %v1785 = vrcp.pop %v1753
        %v1786 = vrcp.pop %v1754
        %v1787 = vrcp.pop %v1755
        %v1788 = vrcp.pop %v1756
        %v1789 = vrcp.pop %v1757
        %v1790 = vrcp.pop %v1758
        %v1791 = vrcp.pop %v1759
        %v1792 = vrcp.pop %v1760
        %v1793 = vrcp.pop %v1761
        %v1794 = vrcp.pop %v1762
        %v1795 = vrcp.pop %v1763
        %v1796 = vrcp.pop %v1764
        %v1797 = vrcp.pop %v1765
        %v1798 = vrcp.pop %v1766
        %v1799 = vrcp.pop %v1767
        %v1800 = vrcp.pop %v1768
        %v1801 = vrcp.pop %v1769
        %v1802 = vrcp.pop %v1770
        %v1803 = vrcp.pop %v1771
        %1804 = vst [vmem:[%s557] sm:$0xff] %v1772
        %1805 = vst [vmem:[%s557 + $0x8] sm:$0xff] %v1773
        %1806 = vst [vmem:[%s557 + $0x10] sm:$0xff] %v1774
        %1807 = vst [vmem:[%s557 + $0x18] sm:$0xff] %v1775
        %1808 = vst [vmem:[%s557 + $0x20] sm:$0xff] %v1776
        %1809 = vst [vmem:[%s557 + $0x28] sm:$0xff] %v1777
        %1810 = vst [vmem:[%s557 + $0x30] sm:$0xff] %v1778
        %1811 = vst [vmem:[%s557 + $0x38] sm:$0xff] %v1779
        %1812 = vst [vmem:[%s557 + $0x40] sm:$0xff] %v1780
        %1813 = vst [vmem:[%s557 + $0x48] sm:$0xff] %v1781
        %1814 = vst [vmem:[%s557 + $0x50] sm:$0xff] %v1782
        %1815 = vst [vmem:[%s557 + $0x58] sm:$0xff] %v1783
        %1816 = vst [vmem:[%s557 + $0x60] sm:$0xff] %v1784
        %1817 = vst [vmem:[%s557 + $0x68] sm:$0xff] %v1785
        %1818 = vst [vmem:[%s557 + $0x70] sm:$0xff] %v1786
        %1819 = vst [vmem:[%s557 + $0x78] sm:$0xff] %v1787
        %1820 = vst [vmem:[%s557 + $0x80] sm:$0xff] %v1788
        %1821 = vst [vmem:[%s557 + $0x88] sm:$0xff] %v1789
        %1822 = vst [vmem:[%s557 + $0x90] sm:$0xff] %v1790
        %1823 = vst [vmem:[%s557 + $0x98] sm:$0xff] %v1791
        %1824 = vst [vmem:[%s557 + $0xa0] sm:$0xff] %v1792
        %1825 = vst [vmem:[%s557 + $0xa8] sm:$0xff] %v1793
        %1826 = vst [vmem:[%s557 + $0xb0] sm:$0xff] %v1794
        %1827 = vst [vmem:[%s557 + $0xb8] sm:$0xff] %v1795
        %1828 = vst [vmem:[%s557 + $0xc0] sm:$0xff] %v1796
        %1829 = vst [vmem:[%s557 + $0xc8] sm:$0xff] %v1797
        %1830 = vst [vmem:[%s557 + $0xd0] sm:$0xff] %v1798
        %1831 = vst [vmem:[%s557 + $0xd8] sm:$0xff] %v1799
        %1832 = vst [vmem:[%s557 + $0xe0] sm:$0xff] %v1800
        %1833 = vst [vmem:[%s557 + $0xe8] sm:$0xff] %v1801
        %1834 = vst [vmem:[%s557 + $0xf0] sm:$0xff] %v1802
        %1835 = vst [vmem:[%s557 + $0xf8] sm:$0xff] %v1803
        %s1836 = sand.u32 %s267, 1
        %s1837 = scalar_lea.sflag [#allocation4], %s1836
        %s1838 = sand.u32 %s267, 1
        %s1839 = smul.addr %s1838, 256
        %s1840 = scalar_lea.vmem [#allocation19], %s1839
        %s1841 = sand.u32 %s293, 1
        %s1842 = scalar_lea.sflag [#allocation21], %s1841
        %s1843 = sand.u32 %s293, 1
        %s1844 = smul.addr %s1843, 256
        %s1845 = scalar_lea.vmem [#allocation20], %s1844
        // Predicated region
        $region101: #{tpu_custom_call.1} parent=59 // pred_check
          %p1846 = pneg %p277
        $region102: #{tpu_custom_call.1} parent=59 // pred_check_branch
          %1848 = sbr.rel (%p1846) target = $region104
        $region103: #{tpu_custom_call.1} parent=59 // pred_region
          %s1849 = smul.u32 16, %s39
          %s1851 = ssub.s32 4096, 4096
          %1852 = vsyncadd %s1837, %s1851
          %s1853 = smul.addr %s1849, 2
          %s1854 = smul.addr %s1853, 128
          %s1855 = scalar_lea.hbm %s10, %s1854
          %s1856 = sshll.u32 %s1840, 4
          %s1857 = int_to_ptr.vmem [resolvable:$true] %s1856
          %1862 = dma.vmem_to_hbm [thread:$0]  %s1857, 4096, %s1855, %s1837, 256, 256, 16
        $region104: #{tpu_custom_call.1} parent=59 // pred_fallthru
          _
        // Predicated region
        $region105: #{tpu_custom_call.1} parent=59 // pred_check
          %p1863 = pneg %p303
        $region106: #{tpu_custom_call.1} parent=59 // pred_check_branch
          %1865 = sbr.rel (%p1863) target = $region108
        $region107: #{tpu_custom_call.1} parent=59 // pred_region
          %s1866 = smul.u32 16, %s39
          %s1868 = ssub.s32 4096, 4096
          %1869 = vsyncadd %s1842, %s1868
          %s1870 = smul.addr %s1866, 2
          %s1871 = smul.addr %s1870, 128
          %s1872 = scalar_lea.hbm %s11, %s1871
          %s1873 = sshll.u32 %s1845, 4
          %s1874 = int_to_ptr.vmem [resolvable:$true] %s1873
          %1879 = dma.vmem_to_hbm [thread:$0]  %s1874, 4096, %s1872, %s1842, 256, 256, 16
        $region108: #{tpu_custom_call.1} parent=59 // pred_fallthru
          _
      $region60: #{tpu_custom_call.1} parent=5 // pred_fallthru
        _
      %p1880 = scmp.le.s32.totalorder 2, %s34
      // Predicated region
      $region109: #{tpu_custom_call.1} parent=5 // pred_check
        %p1881 = pneg %p1880
      $region110: #{tpu_custom_call.1} parent=5 // pred_check_branch
        %1883 = sbr.rel (%p1881) target = $region112
      $region111: #{tpu_custom_call.1} parent=5 // pred_region
        %s1884 = ssub.s32 %s34, 2
        // Predicated region
        $region113: #{tpu_custom_call.1} parent=111 // pred_check
          %p1885 = pneg %p283
        $region114: #{tpu_custom_call.1} parent=111 // pred_check_branch
          %1887 = sbr.rel (%p1885) target = $region116
        $region115: #{tpu_custom_call.1} parent=111 // pred_region
          %s1888 = sand.u32 %s268, 1
          %s1889 = scalar_lea.sflag [#allocation4], %s1888
          %s1890 = sand.u32 %s268, 1
          %s1891 = smul.addr %s1890, 256
          %s1892 = scalar_lea.vmem [#allocation19], %s1891
          %1893 = dma.done %s1889, 4096
        $region116: #{tpu_custom_call.1} parent=111 // pred_fallthru
          _
        // Predicated region
        $region117: #{tpu_custom_call.1} parent=111 // pred_check
          %p1894 = pneg %p309
        $region118: #{tpu_custom_call.1} parent=111 // pred_check_branch
          %1896 = sbr.rel (%p1894) target = $region120
        $region119: #{tpu_custom_call.1} parent=111 // pred_region
          %s1897 = sand.u32 %s294, 1
          %s1898 = scalar_lea.sflag [#allocation21], %s1897
          %s1899 = sand.u32 %s294, 1
          %s1900 = smul.addr %s1899, 256
          %s1901 = scalar_lea.vmem [#allocation20], %s1900
          %1902 = dma.done %s1898, 4096
        $region120: #{tpu_custom_call.1} parent=111 // pred_fallthru
          _
      $region112: #{tpu_custom_call.1} parent=5 // pred_fallthru
        _
    $region6: #{tpu_custom_call.1} parent=1 // loop_footer
      %s38 = sadd.s32 1, %s34
    $region7: #{tpu_custom_call.1} parent=1 // loop_footer_branch
      %33 = sbr.rel target = $region3
    $region8: #{tpu_custom_call.1} parent=1 // loop_exit
      _
    %1903 = vsyncpa [#allocation3], 1
    %s1904 = scalar_lea.sflag [#allocation3], 1
    %1905 = vsyncpa %s1904, 1
    %1906 = vsyncpa [#allocation6], 1
    %1907 = vsyncpa [#allocation9], 1
    %1908 = vsyncpa [#allocation12], 1
    %s1909 = scalar_lea.sflag [#allocation12], 1
    %1910 = vsyncpa %s1909, 1
    %1911 = vsyncpa [#allocation15], 1
    %1912 = vsyncpa [#allocation18], 1
    %1913 = vsyncpa [#allocation4], 1
    %s1914 = scalar_lea.sflag [#allocation4], 1
    %1915 = vsyncpa %s1914, 1
    %1916 = vsyncpa [#allocation21], 1
    %s1917 = scalar_lea.sflag [#allocation21], 1
    %1918 = vsyncpa %s1917, 1

</llo_original>
